<compile_context>
chip_gen: v7x
topology: tpu7x:2x2x1
jax: 0.10.0
libtpu: 0.0.40
codegen_flags: <defaults>
</compile_context>

<pallas_src>
import functools

import jax
import jax.numpy as jnp
from jax.experimental import pallas as pl
from jax.experimental.pallas import tpu as pltpu

H = W = 6            # input spatial size implied by Phi.fc1 (2 * 2 * 2 features)
OH = OW = 4          # after 3x3 valid conv
NEG_SLOPE = 0.01     # nn.LeakyReLU default
BN_EPS = 1e-5        # nn.BatchNorm2d default


def _round_up(x, m):
    return (x + m - 1) // m * m


def _pick_channel_block(B, C):
    """Channel-block (lane) size: as large as possible (<=512, multiple of 128)
    while the two f32 conv accumulators (2 * 16*B*CB * 4 B) stay within ~half
    the vreg file, and >= 2 parallel blocks for v7x's two TCs when C allows."""
    c128 = _round_up(C, 128)
    cb = 512
    while cb > 128 and 2 * (16 * B * cb * 4) > (128 << 10):
        cb -= 128
    cb = min(cb, c128)
    if c128 >= 256:                                   # keep >=2 blocks for v7x
        cb = min(cb, max(128, (c128 // 2) // 128 * 128))
    return cb


# --------------------------------------------------------------------------- #
# Kernel: one block of CB channels, all channels computed lane-parallel.
# --------------------------------------------------------------------------- #
def phi_block_kernel(p_ref, w_ref, o_ref, *, hidden):
    """Per-channel Phi networks for one channel block (channels on lanes).

    p_ref : (18, 4, B*4, CB) bf16 im2col patches; axes =
            (t = ic*9 + kh*3 + kw, d = dh*2 + dw, sublane = b*4 + ph*2 + pw, c)
    w_ref : (43 + 10*hidden, CB) f32 parameter slab, rows:
            [0:36)  conv weight (row = oc*18 + t)   [36:38) conv bias
            [38:40) BN gamma                        [40:42) BN beta
            [42:42+8h) fc1 weight (row = (oc*4 + ph*2 + pw)*hidden + j)
            then fc1 bias (h rows), fc2 weight (h rows), fc2 bias (1 row)
    o_ref : (B, CB) f32 per-channel Phi output (before final Linear+sigmoid)
    """
    B, CB = o_ref.shape
    BP = B * 4
    W1 = 42
    B1 = W1 + 8 * hidden
    W2 = B1 + hidden
    B2 = W2 + hidden

    # ---- Conv2d(2, 2, 3, padding=0): tap-outer loop; each tap tile is loaded
    # once and feeds both output channels.  Bias rows seed the accumulators.
    conv0 = jnp.broadcast_to(w_ref[36:37], (4, BP, CB))
    conv1 = jnp.broadcast_to(w_ref[37:38], (4, BP, CB))
    for t in range(18):
        p_t = p_ref[t].astype(jnp.float32)                 # (4, BP, CB)
        conv0 = conv0 + p_t * w_ref[t:t + 1]
        conv1 = conv1 + p_t * w_ref[18 + t:19 + t]

    # ---- BatchNorm2d(2) training-mode batch stats (biased variance) +
    #      LeakyReLU + MaxPool2d(2) (elementwise max over the leading d axis).
    def bn_lrelu_pool(conv, gamma, beta):
        mean = jnp.mean(conv, axis=(0, 1), keepdims=True)          # (1, 1, CB)
        cen = conv - mean
        var = jnp.mean(cen * cen, axis=(0, 1), keepdims=True)      # biased
        y = cen * jax.lax.rsqrt(var + BN_EPS) * gamma + beta
        y = jnp.where(y > 0, y, NEG_SLOPE * y)                     # LeakyReLU
        return jnp.max(y, axis=0).reshape(B, 4, CB)                # pool over d

    pooled0 = bn_lrelu_pool(conv0, w_ref[38:39], w_ref[40:41])     # oc = 0
    pooled1 = bn_lrelu_pool(conv1, w_ref[39:40], w_ref[41:42])     # oc = 1

    # ---- fc1: Linear(8, hidden); feature f = oc*4 + ph*2 + pw.  The bias rows
    # (broadcast, no zeros+add pass) are the initial accumulator; weight rows
    # are sliced at point of use to keep live ranges short.
    h = jnp.broadcast_to(w_ref[B1:B1 + hidden][None], (B, hidden, CB))
    for p in range(4):
        w1_0 = w_ref[W1 + p * hidden:W1 + (p + 1) * hidden]        # (hidden, CB)
        w1_1 = w_ref[W1 + (4 + p) * hidden:W1 + (5 + p) * hidden]
        h = h + pooled0[:, p:p + 1, :] * w1_0[None]
        h = h + pooled1[:, p:p + 1, :] * w1_1[None]

    # ---- fc2: Linear(hidden, 1) per channel (sublane reduce over hidden).
    o = jnp.sum(h * w_ref[W2:W2 + hidden][None], axis=1) + w_ref[B2:B2 + 1]
    o_ref[...] = o                                                  # (B, CB)


# --------------------------------------------------------------------------- #
# Wrapper: layout preparation (im2col, channel-last, padding) + pallas_call.
# --------------------------------------------------------------------------- #
def _im2col(x1, x2, c_pad):
    """(B, C, 6, 6) x2  ->  (18, 4, B*4, c_pad) bf16 patches, channels on lanes.

    Axes: (t = ic*9 + kh*3 + kw, d = dh*2 + dw, sublane = b*4 + ph*2 + pw, c).
    """
    B, C = x1.shape[0], x1.shape[1]
    xs = jnp.stack([x1, x2], axis=0).astype(jnp.float32)        # (2, B, C, 6, 6)
    xs = jnp.transpose(xs, (0, 1, 3, 4, 2))                     # (2, B, 6, 6, C)
    taps = []
    for kh in range(3):
        for kw in range(3):
            win = xs[:, :, kh:kh + OH, kw:kw + OW, :]           # (ic, b, oh, ow, c)
            win = win.reshape(2, B, 2, 2, 2, 2, C)              # (ic, b, ph, dh, pw, dw, c)
            win = jnp.transpose(win, (0, 1, 3, 5, 2, 4, 6))     # (ic, b, dh, dw, ph, pw, c)
            taps.append(win.reshape(2, B, 4, 4, C))             # (ic, b, d, p, c)
    patches = jnp.stack(taps, axis=1).reshape(18, B, 4, 4, C)   # (t, b, d, p, c)
    patches = jnp.transpose(patches, (0, 2, 1, 3, 4))           # (t, d, b, p, c)
    patches = patches.reshape(18, 4, B * 4, C)                  # fold (b, p) -> sublanes
    if c_pad > C:
        patches = jnp.pad(patches, ((0, 0),) * 3 + ((0, c_pad - C),))
    # bf16 storage halves the dominant HBM stream; the kernel upcasts to f32.
    return patches.astype(jnp.bfloat16)


def _pack_params(params, C, c_pad, hidden):
    """Concatenate all per-channel parameters into one channel-last f32 slab."""
    cw, cb, gamma, beta, w1t, b1, w2, b2, _, _ = params
    rows = [
        cw.T,                                                   # (36, C), row oc*18 + t
        cb.T, gamma.T, beta.T,                                  # (2, C) each
        jnp.transpose(w1t, (1, 2, 0)).reshape(8 * hidden, C),   # row = f*hidden + j
        b1[:, 0, :].T,                                          # (hidden, C)
        w2[:, 0, :].T,                                          # (hidden, C)
        b2.T,                                                   # (1, C)
    ]
    slab = jnp.concatenate(rows, axis=0).astype(jnp.float32)    # (43 + 10*hidden, C)
    if c_pad > C:
        slab = jnp.pad(slab, ((0, 0), (0, c_pad - C)))
    return slab


def rm_network_forward(x1, x2, params):
    B, C = x1.shape[0], x1.shape[1]
    hidden = params[4].shape[-1]
    wf, bf = params[8], params[9]

    cb_blk = _pick_channel_block(B, C)
    c_pad = _round_up(C, cb_blk)
    n_blocks = c_pad // cb_blk

    patches = _im2col(x1, x2, c_pad)                  # (18, 4, B*4, c_pad) bf16
    slab = _pack_params(params, C, c_pad, hidden)     # (43 + 10*hidden, c_pad) f32

    kernel = functools.partial(phi_block_kernel, hidden=hidden)
    o_full = pl.pallas_call(
        kernel,
        out_shape=jax.ShapeDtypeStruct((B, c_pad), jnp.float32),
        grid=(n_blocks,),
        in_specs=[
            pl.BlockSpec((18, 4, B * 4, cb_blk), lambda i: (0, 0, 0, i)),
            pl.BlockSpec((slab.shape[0], cb_blk), lambda i: (0, i)),
        ],
        out_specs=pl.BlockSpec((B, cb_blk), lambda i: (0, i)),
        compiler_params=pltpu.CompilerParams(
            dimension_semantics=("parallel",)),       # no cross-block accumulator
    )(patches, slab)

    # Final Linear(C, 1) + sigmoid: tiny (B, C) x (C,) matvec — plain XLA.
    z = jnp.dot(o_full[:, :C], wf)[:, None] + bf[0]
    return jax.nn.sigmoid(z)


# --------------------------------------------------------------------------- #
# Parameters (PyTorch-equivalent storage layout) and a pure-JAX reference.
# --------------------------------------------------------------------------- #
def init_params(key, C, hidden):
    ks = jax.random.split(key, 10)
    s = 0.3
    cw = jax.random.normal(ks[0], (C, 36), jnp.float32) * s        # Conv2d(2,2,3,3) flat (oc,ic,kh,kw)
    cb = jax.random.normal(ks[1], (C, 2), jnp.float32) * s
    gamma = 1.0 + 0.1 * jax.random.normal(ks[2], (C, 2), jnp.float32)
    beta = 0.1 * jax.random.normal(ks[3], (C, 2), jnp.float32)
    w1t = jax.random.normal(ks[4], (C, 8, hidden), jnp.float32) * s    # fc1 weight, transposed
    b1 = jax.random.normal(ks[5], (C, 1, hidden), jnp.float32) * s
    w2 = jax.random.normal(ks[6], (C, 1, hidden), jnp.float32) * s     # fc2 weight (1, hidden)
    b2 = jax.random.normal(ks[7], (C, 1), jnp.float32) * s
    wf = jax.random.normal(ks[8], (C,), jnp.float32) * s               # final Linear(C, 1) weight
    bf = jax.random.normal(ks[9], (1,), jnp.float32) * s
    return (cw, cb, gamma, beta, w1t, b1, w2, b2, wf, bf)


def rm_network_reference(x1, x2, params):
    """Pure-JAX reference with identical semantics (for verification)."""
    cw, cb, gamma, beta, w1t, b1, w2, b2, wf, bf = params
    B, C = x1.shape[0], x1.shape[1]
    cols = []
    for i in range(C):
        xs = (x1[:, i], x2[:, i])
        pooled_feats = []
        for oc in range(2):
            conv = jnp.zeros((B, OH, OW), jnp.float32)
            for ic in range(2):
                for kh in range(3):
                    for kw in range(3):
                        k = ((oc * 2 + ic) * 3 + kh) * 3 + kw
                        conv = conv + xs[ic][:, kh:kh + OH, kw:kw + OW] * cw[i, k]
            conv = conv + cb[i, oc]
            mean = jnp.mean(conv)
            var = jnp.mean((conv - mean) ** 2)
            y = (conv - mean) / jnp.sqrt(var + BN_EPS) * gamma[i, oc] + beta[i, oc]
            y = jnp.where(y > 0, y, NEG_SLOPE * y)
            pooled = jnp.max(y.reshape(B, 2, 2, 2, 2), axis=(2, 4))   # (B, 2, 2)
            pooled_feats.append(pooled)
        feat = jnp.stack(pooled_feats, axis=1).reshape(B, 8)          # (B, 8), order (oc, ph, pw)
        h = jnp.sum(feat[:, :, None] * w1t[i][None, :, :], axis=1) + b1[i, 0]
        o = jnp.sum(h * w2[i], axis=1, keepdims=True) + b2[i, 0]
        cols.append(o)
    out = jnp.concatenate(cols, axis=-1)                              # (B, C)
    z = jnp.sum(out * wf[None, :], axis=1, keepdims=True) + bf[0]
    return jax.nn.sigmoid(z)


if __name__ == "__main__":
    B, C, hidden = 2, 4, 8
    key = jax.random.PRNGKey(0)
    k1, k2, kp = jax.random.split(key, 3)
    x1 = jax.random.normal(k1, (B, C, H, W), jnp.float32)
    x2 = jax.random.normal(k2, (B, C, H, W), jnp.float32)
    # The kernel transports activations through HBM as bf16 (bandwidth
    # optimization); quantize the test inputs identically so the structural
    # correctness check stays tight (all in-kernel math remains f32).
    x1 = x1.astype(jnp.bfloat16).astype(jnp.float32)
    x2 = x2.astype(jnp.bfloat16).astype(jnp.float32)
    params = init_params(kp, C, hidden)

    fwd = jax.jit(rm_network_forward)
    out = jax.block_until_ready(fwd(x1, x2, params))

    ref = rm_network_reference(x1, x2, params)
    assert out.shape == (B, 1), out.shape
    assert bool(jnp.allclose(out, ref, rtol=1e-4, atol=1e-4)), (out, ref)
    print("KERNEL_OK")
</pallas_src>

<mosaic_0001>
module attributes {stable_mosaic.version = 11 : i64} {
  func.func @phi_block_kernel(%arg0: i32, %arg1: memref<18x4x8x128xbf16, #tpu.memory_space<vmem>>, %arg2: memref<123x128xf32, #tpu.memory_space<vmem>>, %arg3: memref<2x128xf32, #tpu.memory_space<vmem>>) attributes {dimension_semantics = [#tpu.dimension_semantics<parallel>], iteration_bounds = array<i64: 1>, scalar_prefetch = 0 : i64, scratch_operands = 0 : i64, tpu.core_type = #tpu.core_type<tc>, window_params = [{transform_indices = @transform_0, window_bounds = array<i64: 18, 4, 8, 128>}, {transform_indices = @transform_1, window_bounds = array<i64: 123, 128>}, {transform_indices = @transform_2, window_bounds = array<i64: 2, 128>}]} {
    %c36 = arith.constant 36 : index
    %c0 = arith.constant 0 : index
    %0 = vector.load %arg2[%c36, %c0] : memref<123x128xf32, #tpu.memory_space<vmem>>, vector<1x128xf32>
    %1 = vector.shape_cast %0 : vector<1x128xf32> to vector<1x1x128xf32>
    %2 = vector.broadcast %1 : vector<1x1x128xf32> to vector<4x8x128xf32>
    %c37 = arith.constant 37 : index
    %c0_0 = arith.constant 0 : index
    %3 = vector.load %arg2[%c37, %c0_0] : memref<123x128xf32, #tpu.memory_space<vmem>>, vector<1x128xf32>
    %4 = vector.shape_cast %3 : vector<1x128xf32> to vector<1x1x128xf32>
    %5 = vector.broadcast %4 : vector<1x1x128xf32> to vector<4x8x128xf32>
    %c0_1 = arith.constant 0 : index
    %c0_2 = arith.constant 0 : index
    %c0_3 = arith.constant 0 : index
    %c0_4 = arith.constant 0 : index
    %6 = vector.load %arg1[%c0_1, %c0_2, %c0_3, %c0_4] : memref<18x4x8x128xbf16, #tpu.memory_space<vmem>>, vector<1x4x8x128xbf16>
    %7 = vector.shape_cast %6 : vector<1x4x8x128xbf16> to vector<4x8x128xbf16>
    %8 = arith.extf %7 : vector<4x8x128xbf16> to vector<4x8x128xf32>
    %c0_5 = arith.constant 0 : index
    %c0_6 = arith.constant 0 : index
    %9 = vector.load %arg2[%c0_5, %c0_6] : memref<123x128xf32, #tpu.memory_space<vmem>>, vector<1x128xf32>
    %10 = vector.shape_cast %9 : vector<1x128xf32> to vector<1x1x128xf32>
    %11 = vector.broadcast %10 : vector<1x1x128xf32> to vector<4x8x128xf32>
    %12 = arith.mulf %8, %11 : vector<4x8x128xf32>
    %13 = arith.addf %2, %12 : vector<4x8x128xf32>
    %c18 = arith.constant 18 : index
    %c0_7 = arith.constant 0 : index
    %14 = vector.load %arg2[%c18, %c0_7] : memref<123x128xf32, #tpu.memory_space<vmem>>, vector<1x128xf32>
    %15 = vector.shape_cast %14 : vector<1x128xf32> to vector<1x1x128xf32>
    %16 = vector.broadcast %15 : vector<1x1x128xf32> to vector<4x8x128xf32>
    %17 = arith.mulf %8, %16 : vector<4x8x128xf32>
    %18 = arith.addf %5, %17 : vector<4x8x128xf32>
    %c1 = arith.constant 1 : index
    %c0_8 = arith.constant 0 : index
    %c0_9 = arith.constant 0 : index
    %c0_10 = arith.constant 0 : index
    %19 = vector.load %arg1[%c1, %c0_8, %c0_9, %c0_10] : memref<18x4x8x128xbf16, #tpu.memory_space<vmem>>, vector<1x4x8x128xbf16>
    %20 = vector.shape_cast %19 : vector<1x4x8x128xbf16> to vector<4x8x128xbf16>
    %21 = arith.extf %20 : vector<4x8x128xbf16> to vector<4x8x128xf32>
    %c1_11 = arith.constant 1 : index
    %c0_12 = arith.constant 0 : index
    %22 = vector.load %arg2[%c1_11, %c0_12] : memref<123x128xf32, #tpu.memory_space<vmem>>, vector<1x128xf32>
    %23 = vector.shape_cast %22 : vector<1x128xf32> to vector<1x1x128xf32>
    %24 = vector.broadcast %23 : vector<1x1x128xf32> to vector<4x8x128xf32>
    %25 = arith.mulf %21, %24 : vector<4x8x128xf32>
    %26 = arith.addf %13, %25 : vector<4x8x128xf32>
    %c19 = arith.constant 19 : index
    %c0_13 = arith.constant 0 : index
    %27 = vector.load %arg2[%c19, %c0_13] : memref<123x128xf32, #tpu.memory_space<vmem>>, vector<1x128xf32>
    %28 = vector.shape_cast %27 : vector<1x128xf32> to vector<1x1x128xf32>
    %29 = vector.broadcast %28 : vector<1x1x128xf32> to vector<4x8x128xf32>
    %30 = arith.mulf %21, %29 : vector<4x8x128xf32>
    %31 = arith.addf %18, %30 : vector<4x8x128xf32>
    %c2 = arith.constant 2 : index
    %c0_14 = arith.constant 0 : index
    %c0_15 = arith.constant 0 : index
    %c0_16 = arith.constant 0 : index
    %32 = vector.load %arg1[%c2, %c0_14, %c0_15, %c0_16] : memref<18x4x8x128xbf16, #tpu.memory_space<vmem>>, vector<1x4x8x128xbf16>
    %33 = vector.shape_cast %32 : vector<1x4x8x128xbf16> to vector<4x8x128xbf16>
    %34 = arith.extf %33 : vector<4x8x128xbf16> to vector<4x8x128xf32>
    %c2_17 = arith.constant 2 : index
    %c0_18 = arith.constant 0 : index
    %35 = vector.load %arg2[%c2_17, %c0_18] : memref<123x128xf32, #tpu.memory_space<vmem>>, vector<1x128xf32>
    %36 = vector.shape_cast %35 : vector<1x128xf32> to vector<1x1x128xf32>
    %37 = vector.broadcast %36 : vector<1x1x128xf32> to vector<4x8x128xf32>
    %38 = arith.mulf %34, %37 : vector<4x8x128xf32>
    %39 = arith.addf %26, %38 : vector<4x8x128xf32>
    %c20 = arith.constant 20 : index
    %c0_19 = arith.constant 0 : index
    %40 = vector.load %arg2[%c20, %c0_19] : memref<123x128xf32, #tpu.memory_space<vmem>>, vector<1x128xf32>
    %41 = vector.shape_cast %40 : vector<1x128xf32> to vector<1x1x128xf32>
    %42 = vector.broadcast %41 : vector<1x1x128xf32> to vector<4x8x128xf32>
    %43 = arith.mulf %34, %42 : vector<4x8x128xf32>
    %44 = arith.addf %31, %43 : vector<4x8x128xf32>
    %c3 = arith.constant 3 : index
    %c0_20 = arith.constant 0 : index
    %c0_21 = arith.constant 0 : index
    %c0_22 = arith.constant 0 : index
    %45 = vector.load %arg1[%c3, %c0_20, %c0_21, %c0_22] : memref<18x4x8x128xbf16, #tpu.memory_space<vmem>>, vector<1x4x8x128xbf16>
    %46 = vector.shape_cast %45 : vector<1x4x8x128xbf16> to vector<4x8x128xbf16>
    %47 = arith.extf %46 : vector<4x8x128xbf16> to vector<4x8x128xf32>
    %c3_23 = arith.constant 3 : index
    %c0_24 = arith.constant 0 : index
    %48 = vector.load %arg2[%c3_23, %c0_24] : memref<123x128xf32, #tpu.memory_space<vmem>>, vector<1x128xf32>
    %49 = vector.shape_cast %48 : vector<1x128xf32> to vector<1x1x128xf32>
    %50 = vector.broadcast %49 : vector<1x1x128xf32> to vector<4x8x128xf32>
    %51 = arith.mulf %47, %50 : vector<4x8x128xf32>
    %52 = arith.addf %39, %51 : vector<4x8x128xf32>
    %c21 = arith.constant 21 : index
    %c0_25 = arith.constant 0 : index
    %53 = vector.load %arg2[%c21, %c0_25] : memref<123x128xf32, #tpu.memory_space<vmem>>, vector<1x128xf32>
    %54 = vector.shape_cast %53 : vector<1x128xf32> to vector<1x1x128xf32>
    %55 = vector.broadcast %54 : vector<1x1x128xf32> to vector<4x8x128xf32>
    %56 = arith.mulf %47, %55 : vector<4x8x128xf32>
    %57 = arith.addf %44, %56 : vector<4x8x128xf32>
    %c4 = arith.constant 4 : index
    %c0_26 = arith.constant 0 : index
    %c0_27 = arith.constant 0 : index
    %c0_28 = arith.constant 0 : index
    %58 = vector.load %arg1[%c4, %c0_26, %c0_27, %c0_28] : memref<18x4x8x128xbf16, #tpu.memory_space<vmem>>, vector<1x4x8x128xbf16>
    %59 = vector.shape_cast %58 : vector<1x4x8x128xbf16> to vector<4x8x128xbf16>
    %60 = arith.extf %59 : vector<4x8x128xbf16> to vector<4x8x128xf32>
    %c4_29 = arith.constant 4 : index
    %c0_30 = arith.constant 0 : index
    %61 = vector.load %arg2[%c4_29, %c0_30] : memref<123x128xf32, #tpu.memory_space<vmem>>, vector<1x128xf32>
    %62 = vector.shape_cast %61 : vector<1x128xf32> to vector<1x1x128xf32>
    %63 = vector.broadcast %62 : vector<1x1x128xf32> to vector<4x8x128xf32>
    %64 = arith.mulf %60, %63 : vector<4x8x128xf32>
    %65 = arith.addf %52, %64 : vector<4x8x128xf32>
    %c22 = arith.constant 22 : index
    %c0_31 = arith.constant 0 : index
    %66 = vector.load %arg2[%c22, %c0_31] : memref<123x128xf32, #tpu.memory_space<vmem>>, vector<1x128xf32>
    %67 = vector.shape_cast %66 : vector<1x128xf32> to vector<1x1x128xf32>
    %68 = vector.broadcast %67 : vector<1x1x128xf32> to vector<4x8x128xf32>
    %69 = arith.mulf %60, %68 : vector<4x8x128xf32>
    %70 = arith.addf %57, %69 : vector<4x8x128xf32>
    %c5 = arith.constant 5 : index
    %c0_32 = arith.constant 0 : index
    %c0_33 = arith.constant 0 : index
    %c0_34 = arith.constant 0 : index
    %71 = vector.load %arg1[%c5, %c0_32, %c0_33, %c0_34] : memref<18x4x8x128xbf16, #tpu.memory_space<vmem>>, vector<1x4x8x128xbf16>
    %72 = vector.shape_cast %71 : vector<1x4x8x128xbf16> to vector<4x8x128xbf16>
    %73 = arith.extf %72 : vector<4x8x128xbf16> to vector<4x8x128xf32>
    %c5_35 = arith.constant 5 : index
    %c0_36 = arith.constant 0 : index
    %74 = vector.load %arg2[%c5_35, %c0_36] : memref<123x128xf32, #tpu.memory_space<vmem>>, vector<1x128xf32>
    %75 = vector.shape_cast %74 : vector<1x128xf32> to vector<1x1x128xf32>
    %76 = vector.broadcast %75 : vector<1x1x128xf32> to vector<4x8x128xf32>
    %77 = arith.mulf %73, %76 : vector<4x8x128xf32>
    %78 = arith.addf %65, %77 : vector<4x8x128xf32>
    %c23 = arith.constant 23 : index
    %c0_37 = arith.constant 0 : index
    %79 = vector.load %arg2[%c23, %c0_37] : memref<123x128xf32, #tpu.memory_space<vmem>>, vector<1x128xf32>
    %80 = vector.shape_cast %79 : vector<1x128xf32> to vector<1x1x128xf32>
    %81 = vector.broadcast %80 : vector<1x1x128xf32> to vector<4x8x128xf32>
    %82 = arith.mulf %73, %81 : vector<4x8x128xf32>
    %83 = arith.addf %70, %82 : vector<4x8x128xf32>
    %c6 = arith.constant 6 : index
    %c0_38 = arith.constant 0 : index
    %c0_39 = arith.constant 0 : index
    %c0_40 = arith.constant 0 : index
    %84 = vector.load %arg1[%c6, %c0_38, %c0_39, %c0_40] : memref<18x4x8x128xbf16, #tpu.memory_space<vmem>>, vector<1x4x8x128xbf16>
    %85 = vector.shape_cast %84 : vector<1x4x8x128xbf16> to vector<4x8x128xbf16>
    %86 = arith.extf %85 : vector<4x8x128xbf16> to vector<4x8x128xf32>
    %c6_41 = arith.constant 6 : index
    %c0_42 = arith.constant 0 : index
    %87 = vector.load %arg2[%c6_41, %c0_42] : memref<123x128xf32, #tpu.memory_space<vmem>>, vector<1x128xf32>
    %88 = vector.shape_cast %87 : vector<1x128xf32> to vector<1x1x128xf32>
    %89 = vector.broadcast %88 : vector<1x1x128xf32> to vector<4x8x128xf32>
    %90 = arith.mulf %86, %89 : vector<4x8x128xf32>
    %91 = arith.addf %78, %90 : vector<4x8x128xf32>
    %c24 = arith.constant 24 : index
    %c0_43 = arith.constant 0 : index
    %92 = vector.load %arg2[%c24, %c0_43] : memref<123x128xf32, #tpu.memory_space<vmem>>, vector<1x128xf32>
    %93 = vector.shape_cast %92 : vector<1x128xf32> to vector<1x1x128xf32>
    %94 = vector.broadcast %93 : vector<1x1x128xf32> to vector<4x8x128xf32>
    %95 = arith.mulf %86, %94 : vector<4x8x128xf32>
    %96 = arith.addf %83, %95 : vector<4x8x128xf32>
    %c7 = arith.constant 7 : index
    %c0_44 = arith.constant 0 : index
    %c0_45 = arith.constant 0 : index
    %c0_46 = arith.constant 0 : index
    %97 = vector.load %arg1[%c7, %c0_44, %c0_45, %c0_46] : memref<18x4x8x128xbf16, #tpu.memory_space<vmem>>, vector<1x4x8x128xbf16>
    %98 = vector.shape_cast %97 : vector<1x4x8x128xbf16> to vector<4x8x128xbf16>
    %99 = arith.extf %98 : vector<4x8x128xbf16> to vector<4x8x128xf32>
    %c7_47 = arith.constant 7 : index
    %c0_48 = arith.constant 0 : index
    %100 = vector.load %arg2[%c7_47, %c0_48] : memref<123x128xf32, #tpu.memory_space<vmem>>, vector<1x128xf32>
    %101 = vector.shape_cast %100 : vector<1x128xf32> to vector<1x1x128xf32>
    %102 = vector.broadcast %101 : vector<1x1x128xf32> to vector<4x8x128xf32>
    %103 = arith.mulf %99, %102 : vector<4x8x128xf32>
    %104 = arith.addf %91, %103 : vector<4x8x128xf32>
    %c25 = arith.constant 25 : index
    %c0_49 = arith.constant 0 : index
    %105 = vector.load %arg2[%c25, %c0_49] : memref<123x128xf32, #tpu.memory_space<vmem>>, vector<1x128xf32>
    %106 = vector.shape_cast %105 : vector<1x128xf32> to vector<1x1x128xf32>
    %107 = vector.broadcast %106 : vector<1x1x128xf32> to vector<4x8x128xf32>
    %108 = arith.mulf %99, %107 : vector<4x8x128xf32>
    %109 = arith.addf %96, %108 : vector<4x8x128xf32>
    %c8 = arith.constant 8 : index
    %c0_50 = arith.constant 0 : index
    %c0_51 = arith.constant 0 : index
    %c0_52 = arith.constant 0 : index
    %110 = vector.load %arg1[%c8, %c0_50, %c0_51, %c0_52] : memref<18x4x8x128xbf16, #tpu.memory_space<vmem>>, vector<1x4x8x128xbf16>
    %111 = vector.shape_cast %110 : vector<1x4x8x128xbf16> to vector<4x8x128xbf16>
    %112 = arith.extf %111 : vector<4x8x128xbf16> to vector<4x8x128xf32>
    %c8_53 = arith.constant 8 : index
    %c0_54 = arith.constant 0 : index
    %113 = vector.load %arg2[%c8_53, %c0_54] : memref<123x128xf32, #tpu.memory_space<vmem>>, vector<1x128xf32>
    %114 = vector.shape_cast %113 : vector<1x128xf32> to vector<1x1x128xf32>
    %115 = vector.broadcast %114 : vector<1x1x128xf32> to vector<4x8x128xf32>
    %116 = arith.mulf %112, %115 : vector<4x8x128xf32>
    %117 = arith.addf %104, %116 : vector<4x8x128xf32>
    %c26 = arith.constant 26 : index
    %c0_55 = arith.constant 0 : index
    %118 = vector.load %arg2[%c26, %c0_55] : memref<123x128xf32, #tpu.memory_space<vmem>>, vector<1x128xf32>
    %119 = vector.shape_cast %118 : vector<1x128xf32> to vector<1x1x128xf32>
    %120 = vector.broadcast %119 : vector<1x1x128xf32> to vector<4x8x128xf32>
    %121 = arith.mulf %112, %120 : vector<4x8x128xf32>
    %122 = arith.addf %109, %121 : vector<4x8x128xf32>
    %c9 = arith.constant 9 : index
    %c0_56 = arith.constant 0 : index
    %c0_57 = arith.constant 0 : index
    %c0_58 = arith.constant 0 : index
    %123 = vector.load %arg1[%c9, %c0_56, %c0_57, %c0_58] : memref<18x4x8x128xbf16, #tpu.memory_space<vmem>>, vector<1x4x8x128xbf16>
    %124 = vector.shape_cast %123 : vector<1x4x8x128xbf16> to vector<4x8x128xbf16>
    %125 = arith.extf %124 : vector<4x8x128xbf16> to vector<4x8x128xf32>
    %c9_59 = arith.constant 9 : index
    %c0_60 = arith.constant 0 : index
    %126 = vector.load %arg2[%c9_59, %c0_60] : memref<123x128xf32, #tpu.memory_space<vmem>>, vector<1x128xf32>
    %127 = vector.shape_cast %126 : vector<1x128xf32> to vector<1x1x128xf32>
    %128 = vector.broadcast %127 : vector<1x1x128xf32> to vector<4x8x128xf32>
    %129 = arith.mulf %125, %128 : vector<4x8x128xf32>
    %130 = arith.addf %117, %129 : vector<4x8x128xf32>
    %c27 = arith.constant 27 : index
    %c0_61 = arith.constant 0 : index
    %131 = vector.load %arg2[%c27, %c0_61] : memref<123x128xf32, #tpu.memory_space<vmem>>, vector<1x128xf32>
    %132 = vector.shape_cast %131 : vector<1x128xf32> to vector<1x1x128xf32>
    %133 = vector.broadcast %132 : vector<1x1x128xf32> to vector<4x8x128xf32>
    %134 = arith.mulf %125, %133 : vector<4x8x128xf32>
    %135 = arith.addf %122, %134 : vector<4x8x128xf32>
    %c10 = arith.constant 10 : index
    %c0_62 = arith.constant 0 : index
    %c0_63 = arith.constant 0 : index
    %c0_64 = arith.constant 0 : index
    %136 = vector.load %arg1[%c10, %c0_62, %c0_63, %c0_64] : memref<18x4x8x128xbf16, #tpu.memory_space<vmem>>, vector<1x4x8x128xbf16>
    %137 = vector.shape_cast %136 : vector<1x4x8x128xbf16> to vector<4x8x128xbf16>
    %138 = arith.extf %137 : vector<4x8x128xbf16> to vector<4x8x128xf32>
    %c10_65 = arith.constant 10 : index
    %c0_66 = arith.constant 0 : index
    %139 = vector.load %arg2[%c10_65, %c0_66] : memref<123x128xf32, #tpu.memory_space<vmem>>, vector<1x128xf32>
    %140 = vector.shape_cast %139 : vector<1x128xf32> to vector<1x1x128xf32>
    %141 = vector.broadcast %140 : vector<1x1x128xf32> to vector<4x8x128xf32>
    %142 = arith.mulf %138, %141 : vector<4x8x128xf32>
    %143 = arith.addf %130, %142 : vector<4x8x128xf32>
    %c28 = arith.constant 28 : index
    %c0_67 = arith.constant 0 : index
    %144 = vector.load %arg2[%c28, %c0_67] : memref<123x128xf32, #tpu.memory_space<vmem>>, vector<1x128xf32>
    %145 = vector.shape_cast %144 : vector<1x128xf32> to vector<1x1x128xf32>
    %146 = vector.broadcast %145 : vector<1x1x128xf32> to vector<4x8x128xf32>
    %147 = arith.mulf %138, %146 : vector<4x8x128xf32>
    %148 = arith.addf %135, %147 : vector<4x8x128xf32>
    %c11 = arith.constant 11 : index
    %c0_68 = arith.constant 0 : index
    %c0_69 = arith.constant 0 : index
    %c0_70 = arith.constant 0 : index
    %149 = vector.load %arg1[%c11, %c0_68, %c0_69, %c0_70] : memref<18x4x8x128xbf16, #tpu.memory_space<vmem>>, vector<1x4x8x128xbf16>
    %150 = vector.shape_cast %149 : vector<1x4x8x128xbf16> to vector<4x8x128xbf16>
    %151 = arith.extf %150 : vector<4x8x128xbf16> to vector<4x8x128xf32>
    %c11_71 = arith.constant 11 : index
    %c0_72 = arith.constant 0 : index
    %152 = vector.load %arg2[%c11_71, %c0_72] : memref<123x128xf32, #tpu.memory_space<vmem>>, vector<1x128xf32>
    %153 = vector.shape_cast %152 : vector<1x128xf32> to vector<1x1x128xf32>
    %154 = vector.broadcast %153 : vector<1x1x128xf32> to vector<4x8x128xf32>
    %155 = arith.mulf %151, %154 : vector<4x8x128xf32>
    %156 = arith.addf %143, %155 : vector<4x8x128xf32>
    %c29 = arith.constant 29 : index
    %c0_73 = arith.constant 0 : index
    %157 = vector.load %arg2[%c29, %c0_73] : memref<123x128xf32, #tpu.memory_space<vmem>>, vector<1x128xf32>
    %158 = vector.shape_cast %157 : vector<1x128xf32> to vector<1x1x128xf32>
    %159 = vector.broadcast %158 : vector<1x1x128xf32> to vector<4x8x128xf32>
    %160 = arith.mulf %151, %159 : vector<4x8x128xf32>
    %161 = arith.addf %148, %160 : vector<4x8x128xf32>
    %c12 = arith.constant 12 : index
    %c0_74 = arith.constant 0 : index
    %c0_75 = arith.constant 0 : index
    %c0_76 = arith.constant 0 : index
    %162 = vector.load %arg1[%c12, %c0_74, %c0_75, %c0_76] : memref<18x4x8x128xbf16, #tpu.memory_space<vmem>>, vector<1x4x8x128xbf16>
    %163 = vector.shape_cast %162 : vector<1x4x8x128xbf16> to vector<4x8x128xbf16>
    %164 = arith.extf %163 : vector<4x8x128xbf16> to vector<4x8x128xf32>
    %c12_77 = arith.constant 12 : index
    %c0_78 = arith.constant 0 : index
    %165 = vector.load %arg2[%c12_77, %c0_78] : memref<123x128xf32, #tpu.memory_space<vmem>>, vector<1x128xf32>
    %166 = vector.shape_cast %165 : vector<1x128xf32> to vector<1x1x128xf32>
    %167 = vector.broadcast %166 : vector<1x1x128xf32> to vector<4x8x128xf32>
    %168 = arith.mulf %164, %167 : vector<4x8x128xf32>
    %169 = arith.addf %156, %168 : vector<4x8x128xf32>
    %c30 = arith.constant 30 : index
    %c0_79 = arith.constant 0 : index
    %170 = vector.load %arg2[%c30, %c0_79] : memref<123x128xf32, #tpu.memory_space<vmem>>, vector<1x128xf32>
    %171 = vector.shape_cast %170 : vector<1x128xf32> to vector<1x1x128xf32>
    %172 = vector.broadcast %171 : vector<1x1x128xf32> to vector<4x8x128xf32>
    %173 = arith.mulf %164, %172 : vector<4x8x128xf32>
    %174 = arith.addf %161, %173 : vector<4x8x128xf32>
    %c13 = arith.constant 13 : index
    %c0_80 = arith.constant 0 : index
    %c0_81 = arith.constant 0 : index
    %c0_82 = arith.constant 0 : index
    %175 = vector.load %arg1[%c13, %c0_80, %c0_81, %c0_82] : memref<18x4x8x128xbf16, #tpu.memory_space<vmem>>, vector<1x4x8x128xbf16>
    %176 = vector.shape_cast %175 : vector<1x4x8x128xbf16> to vector<4x8x128xbf16>
    %177 = arith.extf %176 : vector<4x8x128xbf16> to vector<4x8x128xf32>
    %c13_83 = arith.constant 13 : index
    %c0_84 = arith.constant 0 : index
    %178 = vector.load %arg2[%c13_83, %c0_84] : memref<123x128xf32, #tpu.memory_space<vmem>>, vector<1x128xf32>
    %179 = vector.shape_cast %178 : vector<1x128xf32> to vector<1x1x128xf32>
    %180 = vector.broadcast %179 : vector<1x1x128xf32> to vector<4x8x128xf32>
    %181 = arith.mulf %177, %180 : vector<4x8x128xf32>
    %182 = arith.addf %169, %181 : vector<4x8x128xf32>
    %c31 = arith.constant 31 : index
    %c0_85 = arith.constant 0 : index
    %183 = vector.load %arg2[%c31, %c0_85] : memref<123x128xf32, #tpu.memory_space<vmem>>, vector<1x128xf32>
    %184 = vector.shape_cast %183 : vector<1x128xf32> to vector<1x1x128xf32>
    %185 = vector.broadcast %184 : vector<1x1x128xf32> to vector<4x8x128xf32>
    %186 = arith.mulf %177, %185 : vector<4x8x128xf32>
    %187 = arith.addf %174, %186 : vector<4x8x128xf32>
    %c14 = arith.constant 14 : index
    %c0_86 = arith.constant 0 : index
    %c0_87 = arith.constant 0 : index
    %c0_88 = arith.constant 0 : index
    %188 = vector.load %arg1[%c14, %c0_86, %c0_87, %c0_88] : memref<18x4x8x128xbf16, #tpu.memory_space<vmem>>, vector<1x4x8x128xbf16>
    %189 = vector.shape_cast %188 : vector<1x4x8x128xbf16> to vector<4x8x128xbf16>
    %190 = arith.extf %189 : vector<4x8x128xbf16> to vector<4x8x128xf32>
    %c14_89 = arith.constant 14 : index
    %c0_90 = arith.constant 0 : index
    %191 = vector.load %arg2[%c14_89, %c0_90] : memref<123x128xf32, #tpu.memory_space<vmem>>, vector<1x128xf32>
    %192 = vector.shape_cast %191 : vector<1x128xf32> to vector<1x1x128xf32>
    %193 = vector.broadcast %192 : vector<1x1x128xf32> to vector<4x8x128xf32>
    %194 = arith.mulf %190, %193 : vector<4x8x128xf32>
    %195 = arith.addf %182, %194 : vector<4x8x128xf32>
    %c32 = arith.constant 32 : index
    %c0_91 = arith.constant 0 : index
    %196 = vector.load %arg2[%c32, %c0_91] : memref<123x128xf32, #tpu.memory_space<vmem>>, vector<1x128xf32>
    %197 = vector.shape_cast %196 : vector<1x128xf32> to vector<1x1x128xf32>
    %198 = vector.broadcast %197 : vector<1x1x128xf32> to vector<4x8x128xf32>
    %199 = arith.mulf %190, %198 : vector<4x8x128xf32>
    %200 = arith.addf %187, %199 : vector<4x8x128xf32>
    %c15 = arith.constant 15 : index
    %c0_92 = arith.constant 0 : index
    %c0_93 = arith.constant 0 : index
    %c0_94 = arith.constant 0 : index
    %201 = vector.load %arg1[%c15, %c0_92, %c0_93, %c0_94] : memref<18x4x8x128xbf16, #tpu.memory_space<vmem>>, vector<1x4x8x128xbf16>
    %202 = vector.shape_cast %201 : vector<1x4x8x128xbf16> to vector<4x8x128xbf16>
    %203 = arith.extf %202 : vector<4x8x128xbf16> to vector<4x8x128xf32>
    %c15_95 = arith.constant 15 : index
    %c0_96 = arith.constant 0 : index
    %204 = vector.load %arg2[%c15_95, %c0_96] : memref<123x128xf32, #tpu.memory_space<vmem>>, vector<1x128xf32>
    %205 = vector.shape_cast %204 : vector<1x128xf32> to vector<1x1x128xf32>
    %206 = vector.broadcast %205 : vector<1x1x128xf32> to vector<4x8x128xf32>
    %207 = arith.mulf %203, %206 : vector<4x8x128xf32>
    %208 = arith.addf %195, %207 : vector<4x8x128xf32>
    %c33 = arith.constant 33 : index
    %c0_97 = arith.constant 0 : index
    %209 = vector.load %arg2[%c33, %c0_97] : memref<123x128xf32, #tpu.memory_space<vmem>>, vector<1x128xf32>
    %210 = vector.shape_cast %209 : vector<1x128xf32> to vector<1x1x128xf32>
    %211 = vector.broadcast %210 : vector<1x1x128xf32> to vector<4x8x128xf32>
    %212 = arith.mulf %203, %211 : vector<4x8x128xf32>
    %213 = arith.addf %200, %212 : vector<4x8x128xf32>
    %c16 = arith.constant 16 : index
    %c0_98 = arith.constant 0 : index
    %c0_99 = arith.constant 0 : index
    %c0_100 = arith.constant 0 : index
    %214 = vector.load %arg1[%c16, %c0_98, %c0_99, %c0_100] : memref<18x4x8x128xbf16, #tpu.memory_space<vmem>>, vector<1x4x8x128xbf16>
    %215 = vector.shape_cast %214 : vector<1x4x8x128xbf16> to vector<4x8x128xbf16>
    %216 = arith.extf %215 : vector<4x8x128xbf16> to vector<4x8x128xf32>
    %c16_101 = arith.constant 16 : index
    %c0_102 = arith.constant 0 : index
    %217 = vector.load %arg2[%c16_101, %c0_102] : memref<123x128xf32, #tpu.memory_space<vmem>>, vector<1x128xf32>
    %218 = vector.shape_cast %217 : vector<1x128xf32> to vector<1x1x128xf32>
    %219 = vector.broadcast %218 : vector<1x1x128xf32> to vector<4x8x128xf32>
    %220 = arith.mulf %216, %219 : vector<4x8x128xf32>
    %221 = arith.addf %208, %220 : vector<4x8x128xf32>
    %c34 = arith.constant 34 : index
    %c0_103 = arith.constant 0 : index
    %222 = vector.load %arg2[%c34, %c0_103] : memref<123x128xf32, #tpu.memory_space<vmem>>, vector<1x128xf32>
    %223 = vector.shape_cast %222 : vector<1x128xf32> to vector<1x1x128xf32>
    %224 = vector.broadcast %223 : vector<1x1x128xf32> to vector<4x8x128xf32>
    %225 = arith.mulf %216, %224 : vector<4x8x128xf32>
    %226 = arith.addf %213, %225 : vector<4x8x128xf32>
    %c17 = arith.constant 17 : index
    %c0_104 = arith.constant 0 : index
    %c0_105 = arith.constant 0 : index
    %c0_106 = arith.constant 0 : index
    %227 = vector.load %arg1[%c17, %c0_104, %c0_105, %c0_106] : memref<18x4x8x128xbf16, #tpu.memory_space<vmem>>, vector<1x4x8x128xbf16>
    %228 = vector.shape_cast %227 : vector<1x4x8x128xbf16> to vector<4x8x128xbf16>
    %229 = arith.extf %228 : vector<4x8x128xbf16> to vector<4x8x128xf32>
    %c17_107 = arith.constant 17 : index
    %c0_108 = arith.constant 0 : index
    %230 = vector.load %arg2[%c17_107, %c0_108] : memref<123x128xf32, #tpu.memory_space<vmem>>, vector<1x128xf32>
    %231 = vector.shape_cast %230 : vector<1x128xf32> to vector<1x1x128xf32>
    %232 = vector.broadcast %231 : vector<1x1x128xf32> to vector<4x8x128xf32>
    %233 = arith.mulf %229, %232 : vector<4x8x128xf32>
    %234 = arith.addf %221, %233 : vector<4x8x128xf32>
    %c35 = arith.constant 35 : index
    %c0_109 = arith.constant 0 : index
    %235 = vector.load %arg2[%c35, %c0_109] : memref<123x128xf32, #tpu.memory_space<vmem>>, vector<1x128xf32>
    %236 = vector.shape_cast %235 : vector<1x128xf32> to vector<1x1x128xf32>
    %237 = vector.broadcast %236 : vector<1x1x128xf32> to vector<4x8x128xf32>
    %238 = arith.mulf %229, %237 : vector<4x8x128xf32>
    %239 = arith.addf %226, %238 : vector<4x8x128xf32>
    %c38 = arith.constant 38 : index
    %c0_110 = arith.constant 0 : index
    %240 = vector.load %arg2[%c38, %c0_110] : memref<123x128xf32, #tpu.memory_space<vmem>>, vector<1x128xf32>
    %c40 = arith.constant 40 : index
    %c0_111 = arith.constant 0 : index
    %241 = vector.load %arg2[%c40, %c0_111] : memref<123x128xf32, #tpu.memory_space<vmem>>, vector<1x128xf32>
    %cst = arith.constant dense<0.000000e+00> : vector<128xf32>
    %242 = vector.multi_reduction <add>, %234, %cst [0, 1] : vector<4x8x128xf32> to vector<128xf32>
    %243 = vector.shape_cast %242 : vector<128xf32> to vector<1x1x128xf32>
    %cst_112 = arith.constant 3.200000e+01 : f32
    %244 = vector.broadcast %cst_112 : f32 to vector<1x1x128xf32>
    %245 = arith.divf %243, %244 : vector<1x1x128xf32>
    %246 = vector.broadcast %245 : vector<1x1x128xf32> to vector<4x8x128xf32>
    %247 = arith.subf %234, %246 : vector<4x8x128xf32>
    %248 = arith.mulf %247, %247 : vector<4x8x128xf32>
    %cst_113 = arith.constant dense<0.000000e+00> : vector<128xf32>
    %249 = vector.multi_reduction <add>, %248, %cst_113 [0, 1] : vector<4x8x128xf32> to vector<128xf32>
    %250 = vector.shape_cast %249 : vector<128xf32> to vector<1x1x128xf32>
    %cst_114 = arith.constant 3.200000e+01 : f32
    %251 = vector.broadcast %cst_114 : f32 to vector<1x1x128xf32>
    %252 = arith.divf %250, %251 : vector<1x1x128xf32>
    %cst_115 = arith.constant 9.99999974E-6 : f32
    %253 = vector.broadcast %cst_115 : f32 to vector<1x1x128xf32>
    %254 = arith.addf %252, %253 : vector<1x1x128xf32>
    %255 = math.rsqrt %254 : vector<1x1x128xf32>
    %256 = vector.broadcast %255 : vector<1x1x128xf32> to vector<4x8x128xf32>
    %257 = arith.mulf %247, %256 : vector<4x8x128xf32>
    %258 = vector.shape_cast %240 : vector<1x128xf32> to vector<1x1x128xf32>
    %259 = vector.broadcast %258 : vector<1x1x128xf32> to vector<4x8x128xf32>
    %260 = arith.mulf %257, %259 : vector<4x8x128xf32>
    %261 = vector.shape_cast %241 : vector<1x128xf32> to vector<1x1x128xf32>
    %262 = vector.broadcast %261 : vector<1x1x128xf32> to vector<4x8x128xf32>
    %263 = arith.addf %260, %262 : vector<4x8x128xf32>
    %cst_116 = arith.constant 0.000000e+00 : f32
    %264 = vector.broadcast %cst_116 : f32 to vector<4x8x128xf32>
    %265 = arith.cmpf ogt, %263, %264 : vector<4x8x128xf32>
    %cst_117 = arith.constant 0.00999999977 : f32
    %266 = vector.broadcast %cst_117 : f32 to vector<4x8x128xf32>
    %267 = arith.mulf %266, %263 : vector<4x8x128xf32>
    %268 = arith.select %265, %263, %267 : vector<4x8x128xi1>, vector<4x8x128xf32>
    %cst_118 = arith.constant dense<0xFF800000> : vector<8x128xf32>
    %269 = vector.multi_reduction <maximumf>, %268, %cst_118 [0] : vector<4x8x128xf32> to vector<8x128xf32>
    %270 = vector.shape_cast %269 : vector<8x128xf32> to vector<2x4x128xf32>
    %c39 = arith.constant 39 : index
    %c0_119 = arith.constant 0 : index
    %271 = vector.load %arg2[%c39, %c0_119] : memref<123x128xf32, #tpu.memory_space<vmem>>, vector<1x128xf32>
    %c41 = arith.constant 41 : index
    %c0_120 = arith.constant 0 : index
    %272 = vector.load %arg2[%c41, %c0_120] : memref<123x128xf32, #tpu.memory_space<vmem>>, vector<1x128xf32>
    %cst_121 = arith.constant dense<0.000000e+00> : vector<128xf32>
    %273 = vector.multi_reduction <add>, %239, %cst_121 [0, 1] : vector<4x8x128xf32> to vector<128xf32>
    %274 = vector.shape_cast %273 : vector<128xf32> to vector<1x1x128xf32>
    %cst_122 = arith.constant 3.200000e+01 : f32
    %275 = vector.broadcast %cst_122 : f32 to vector<1x1x128xf32>
    %276 = arith.divf %274, %275 : vector<1x1x128xf32>
    %277 = vector.broadcast %276 : vector<1x1x128xf32> to vector<4x8x128xf32>
    %278 = arith.subf %239, %277 : vector<4x8x128xf32>
    %279 = arith.mulf %278, %278 : vector<4x8x128xf32>
    %cst_123 = arith.constant dense<0.000000e+00> : vector<128xf32>
    %280 = vector.multi_reduction <add>, %279, %cst_123 [0, 1] : vector<4x8x128xf32> to vector<128xf32>
    %281 = vector.shape_cast %280 : vector<128xf32> to vector<1x1x128xf32>
    %cst_124 = arith.constant 3.200000e+01 : f32
    %282 = vector.broadcast %cst_124 : f32 to vector<1x1x128xf32>
    %283 = arith.divf %281, %282 : vector<1x1x128xf32>
    %cst_125 = arith.constant 9.99999974E-6 : f32
    %284 = vector.broadcast %cst_125 : f32 to vector<1x1x128xf32>
    %285 = arith.addf %283, %284 : vector<1x1x128xf32>
    %286 = math.rsqrt %285 : vector<1x1x128xf32>
    %287 = vector.broadcast %286 : vector<1x1x128xf32> to vector<4x8x128xf32>
    %288 = arith.mulf %278, %287 : vector<4x8x128xf32>
    %289 = vector.shape_cast %271 : vector<1x128xf32> to vector<1x1x128xf32>
    %290 = vector.broadcast %289 : vector<1x1x128xf32> to vector<4x8x128xf32>
    %291 = arith.mulf %288, %290 : vector<4x8x128xf32>
    %292 = vector.shape_cast %272 : vector<1x128xf32> to vector<1x1x128xf32>
    %293 = vector.broadcast %292 : vector<1x1x128xf32> to vector<4x8x128xf32>
    %294 = arith.addf %291, %293 : vector<4x8x128xf32>
    %cst_126 = arith.constant 0.000000e+00 : f32
    %295 = vector.broadcast %cst_126 : f32 to vector<4x8x128xf32>
    %296 = arith.cmpf ogt, %294, %295 : vector<4x8x128xf32>
    %cst_127 = arith.constant 0.00999999977 : f32
    %297 = vector.broadcast %cst_127 : f32 to vector<4x8x128xf32>
    %298 = arith.mulf %297, %294 : vector<4x8x128xf32>
    %299 = arith.select %296, %294, %298 : vector<4x8x128xi1>, vector<4x8x128xf32>
    %cst_128 = arith.constant dense<0xFF800000> : vector<8x128xf32>
    %300 = vector.multi_reduction <maximumf>, %299, %cst_128 [0] : vector<4x8x128xf32> to vector<8x128xf32>
    %301 = vector.shape_cast %300 : vector<8x128xf32> to vector<2x4x128xf32>
    %c106 = arith.constant 106 : index
    %c0_129 = arith.constant 0 : index
    %302 = vector.load %arg2[%c106, %c0_129] : memref<123x128xf32, #tpu.memory_space<vmem>>, vector<8x128xf32>
    %303 = vector.shape_cast %302 : vector<8x128xf32> to vector<1x8x128xf32>
    %304 = vector.shape_cast %303 : vector<1x8x128xf32> to vector<1x8x128xf32>
    %305 = vector.broadcast %304 : vector<1x8x128xf32> to vector<2x8x128xf32>
    %c42 = arith.constant 42 : index
    %c0_130 = arith.constant 0 : index
    %306 = vector.load %arg2[%c42, %c0_130] : memref<123x128xf32, #tpu.memory_space<vmem>>, vector<8x128xf32>
    %c74 = arith.constant 74 : index
    %c0_131 = arith.constant 0 : index
    %307 = vector.load %arg2[%c74, %c0_131] : memref<123x128xf32, #tpu.memory_space<vmem>>, vector<8x128xf32>
    %308 = vector.extract_strided_slice %270 {offsets = [0, 0, 0], sizes = [2, 1, 128], strides = [1, 1, 1]} : vector<2x4x128xf32> to vector<2x1x128xf32>
    %309 = vector.shape_cast %306 : vector<8x128xf32> to vector<1x8x128xf32>
    %310 = vector.broadcast %308 : vector<2x1x128xf32> to vector<2x8x128xf32>
    %311 = vector.broadcast %309 : vector<1x8x128xf32> to vector<2x8x128xf32>
    %312 = arith.mulf %310, %311 : vector<2x8x128xf32>
    %313 = arith.addf %305, %312 : vector<2x8x128xf32>
    %314 = vector.extract_strided_slice %301 {offsets = [0, 0, 0], sizes = [2, 1, 128], strides = [1, 1, 1]} : vector<2x4x128xf32> to vector<2x1x128xf32>
    %315 = vector.shape_cast %307 : vector<8x128xf32> to vector<1x8x128xf32>
    %316 = vector.broadcast %314 : vector<2x1x128xf32> to vector<2x8x128xf32>
    %317 = vector.broadcast %315 : vector<1x8x128xf32> to vector<2x8x128xf32>
    %318 = arith.mulf %316, %317 : vector<2x8x128xf32>
    %319 = arith.addf %313, %318 : vector<2x8x128xf32>
    %c50 = arith.constant 50 : index
    %c0_132 = arith.constant 0 : index
    %320 = vector.load %arg2[%c50, %c0_132] : memref<123x128xf32, #tpu.memory_space<vmem>>, vector<8x128xf32>
    %c82 = arith.constant 82 : index
    %c0_133 = arith.constant 0 : index
    %321 = vector.load %arg2[%c82, %c0_133] : memref<123x128xf32, #tpu.memory_space<vmem>>, vector<8x128xf32>
    %322 = vector.extract_strided_slice %270 {offsets = [0, 1, 0], sizes = [2, 1, 128], strides = [1, 1, 1]} : vector<2x4x128xf32> to vector<2x1x128xf32>
    %323 = vector.shape_cast %320 : vector<8x128xf32> to vector<1x8x128xf32>
    %324 = vector.broadcast %322 : vector<2x1x128xf32> to vector<2x8x128xf32>
    %325 = vector.broadcast %323 : vector<1x8x128xf32> to vector<2x8x128xf32>
    %326 = arith.mulf %324, %325 : vector<2x8x128xf32>
    %327 = arith.addf %319, %326 : vector<2x8x128xf32>
    %328 = vector.extract_strided_slice %301 {offsets = [0, 1, 0], sizes = [2, 1, 128], strides = [1, 1, 1]} : vector<2x4x128xf32> to vector<2x1x128xf32>
    %329 = vector.shape_cast %321 : vector<8x128xf32> to vector<1x8x128xf32>
    %330 = vector.broadcast %328 : vector<2x1x128xf32> to vector<2x8x128xf32>
    %331 = vector.broadcast %329 : vector<1x8x128xf32> to vector<2x8x128xf32>
    %332 = arith.mulf %330, %331 : vector<2x8x128xf32>
    %333 = arith.addf %327, %332 : vector<2x8x128xf32>
    %c58 = arith.constant 58 : index
    %c0_134 = arith.constant 0 : index
    %334 = vector.load %arg2[%c58, %c0_134] : memref<123x128xf32, #tpu.memory_space<vmem>>, vector<8x128xf32>
    %c90 = arith.constant 90 : index
    %c0_135 = arith.constant 0 : index
    %335 = vector.load %arg2[%c90, %c0_135] : memref<123x128xf32, #tpu.memory_space<vmem>>, vector<8x128xf32>
    %336 = vector.extract_strided_slice %270 {offsets = [0, 2, 0], sizes = [2, 1, 128], strides = [1, 1, 1]} : vector<2x4x128xf32> to vector<2x1x128xf32>
    %337 = vector.shape_cast %334 : vector<8x128xf32> to vector<1x8x128xf32>
    %338 = vector.broadcast %336 : vector<2x1x128xf32> to vector<2x8x128xf32>
    %339 = vector.broadcast %337 : vector<1x8x128xf32> to vector<2x8x128xf32>
    %340 = arith.mulf %338, %339 : vector<2x8x128xf32>
    %341 = arith.addf %333, %340 : vector<2x8x128xf32>
    %342 = vector.extract_strided_slice %301 {offsets = [0, 2, 0], sizes = [2, 1, 128], strides = [1, 1, 1]} : vector<2x4x128xf32> to vector<2x1x128xf32>
    %343 = vector.shape_cast %335 : vector<8x128xf32> to vector<1x8x128xf32>
    %344 = vector.broadcast %342 : vector<2x1x128xf32> to vector<2x8x128xf32>
    %345 = vector.broadcast %343 : vector<1x8x128xf32> to vector<2x8x128xf32>
    %346 = arith.mulf %344, %345 : vector<2x8x128xf32>
    %347 = arith.addf %341, %346 : vector<2x8x128xf32>
    %c66 = arith.constant 66 : index
    %c0_136 = arith.constant 0 : index
    %348 = vector.load %arg2[%c66, %c0_136] : memref<123x128xf32, #tpu.memory_space<vmem>>, vector<8x128xf32>
    %c98 = arith.constant 98 : index
    %c0_137 = arith.constant 0 : index
    %349 = vector.load %arg2[%c98, %c0_137] : memref<123x128xf32, #tpu.memory_space<vmem>>, vector<8x128xf32>
    %350 = vector.extract_strided_slice %270 {offsets = [0, 3, 0], sizes = [2, 1, 128], strides = [1, 1, 1]} : vector<2x4x128xf32> to vector<2x1x128xf32>
    %351 = vector.shape_cast %348 : vector<8x128xf32> to vector<1x8x128xf32>
    %352 = vector.broadcast %350 : vector<2x1x128xf32> to vector<2x8x128xf32>
    %353 = vector.broadcast %351 : vector<1x8x128xf32> to vector<2x8x128xf32>
    %354 = arith.mulf %352, %353 : vector<2x8x128xf32>
    %355 = arith.addf %347, %354 : vector<2x8x128xf32>
    %356 = vector.extract_strided_slice %301 {offsets = [0, 3, 0], sizes = [2, 1, 128], strides = [1, 1, 1]} : vector<2x4x128xf32> to vector<2x1x128xf32>
    %357 = vector.shape_cast %349 : vector<8x128xf32> to vector<1x8x128xf32>
    %358 = vector.broadcast %356 : vector<2x1x128xf32> to vector<2x8x128xf32>
    %359 = vector.broadcast %357 : vector<1x8x128xf32> to vector<2x8x128xf32>
    %360 = arith.mulf %358, %359 : vector<2x8x128xf32>
    %361 = arith.addf %355, %360 : vector<2x8x128xf32>
    %c114 = arith.constant 114 : index
    %c0_138 = arith.constant 0 : index
    %362 = vector.load %arg2[%c114, %c0_138] : memref<123x128xf32, #tpu.memory_space<vmem>>, vector<8x128xf32>
    %363 = vector.shape_cast %362 : vector<8x128xf32> to vector<1x8x128xf32>
    %364 = vector.broadcast %363 : vector<1x8x128xf32> to vector<2x8x128xf32>
    %365 = arith.mulf %361, %364 : vector<2x8x128xf32>
    %cst_139 = arith.constant dense<0.000000e+00> : vector<2x128xf32>
    %366 = vector.multi_reduction <add>, %365, %cst_139 [1] : vector<2x8x128xf32> to vector<2x128xf32>
    %c122 = arith.constant 122 : index
    %c0_140 = arith.constant 0 : index
    %367 = vector.load %arg2[%c122, %c0_140] : memref<123x128xf32, #tpu.memory_space<vmem>>, vector<1x128xf32>
    %368 = vector.broadcast %367 : vector<1x128xf32> to vector<2x128xf32>
    %369 = arith.addf %366, %368 : vector<2x128xf32>
    %c0_141 = arith.constant 0 : index
    %c0_142 = arith.constant 0 : index
    %370 = vector.load %arg3[%c0_141, %c0_142] : memref<2x128xf32, #tpu.memory_space<vmem>>, vector<2x128xf32>
    tpu.vector_store %arg3[%c0_141, %c0_142], %369 {strides = array<i32>} : memref<2x128xf32, #tpu.memory_space<vmem>>, vector<2x128xf32>,
    return
  }
  func.func @transform_0(%arg0: i32) -> (i32, i32, i32, i32) {
    %c0_i32 = arith.constant 0 : i32
    %c0_i32_0 = arith.constant 0 : i32
    %c0_i32_1 = arith.constant 0 : i32
    %c0_i32_2 = arith.constant 0 : i32
    return %c0_i32, %c0_i32_0, %c0_i32_1, %arg0 : i32, i32, i32, i32
  }
  func.func @transform_1(%arg0: i32) -> (i32, i32) {
    %c0_i32 = arith.constant 0 : i32
    %c0_i32_0 = arith.constant 0 : i32
    return %c0_i32, %arg0 : i32, i32
  }
  func.func @transform_2(%arg0: i32) -> (i32, i32) {
    %c0_i32 = arith.constant 0 : i32
    %c0_i32_0 = arith.constant 0 : i32
    return %c0_i32, %arg0 : i32, i32
  }
}

</mosaic_0001>

<llo_original>
// kernel: rm_network_forward.1
$region0: #{rm_network_forward.1}
  #allocation0 [shape = 'u32[]', space=smem, size = 0x4, offset = 0x4, fixed_abs, tag = 'smem constant byte address 0x4 - core index']
  #allocation1 [shape = 'u32[144,128]{1,0:T(1,128)}', space=vmem, size = 0x12000, scoped, tag = 'internal scratch']
  %s0 = inlined_call_operand.vmem [shape: bf16[18,4,8,128], index: 0, kind: input, shape index: {}]
  %s1 = inlined_call_operand.vmem [shape: f32[123,128], index: 1, kind: input, shape index: {}]
  %s2 = inlined_call_operand.vmem [shape: f32[2,128], index: 2, kind: output, shape index: {}]
  %s3 = sld [smem:[#allocation0]]
  $region18: #{rm_network_forward.1} parent=0
    _
  %s5 = ssub.s32 1, %s3
  %s6 = scalar_select 0, %s5, %s3
  // Predicated region
  $region2: #{rm_network_forward.1} parent=0 // pred_check
    _
  $region3: #{rm_network_forward.1} parent=0 // pred_check_branch
    %8 = sbr.rel (0) target = $region5
  $region4: #{rm_network_forward.1} parent=0 // pred_region
    _
  $region5: #{rm_network_forward.1} parent=0 // pred_fallthru
    _
  // Predicated region
  $region6: #{rm_network_forward.1} parent=0 // pred_check
    _
  $region7: #{rm_network_forward.1} parent=0 // pred_check_branch
    %10 = sbr.rel (0) target = $region9
  $region8: #{rm_network_forward.1} parent=0 // pred_region
    _
  $region9: #{rm_network_forward.1} parent=0 // pred_fallthru
    _
  %v11 = vld [vmem:[%s1 + $0x24] sm:$0x1]
  %v12 = vlaneseq
  %v13 = vshrl.u32 %v12, 7
  %v14 = vsub.s32 0, %v13
  %v15 = vrot.slane %v11, %v14
  %v16 = vld [vmem:[%s1 + $0x25] sm:$0x1]
  %v17 = vlaneseq
  %v18 = vshrl.u32 %v17, 7
  %v19 = vsub.s32 0, %v18
  %v20 = vrot.slane %v16, %v19
  %v21 = vld [vmem:[%s0] sm:$0xf]
  %v22 = vld [vmem:[%s0 + $0x4] sm:$0xf]
  %v23 = vld [vmem:[%s0 + $0x8] sm:$0xf]
  %v24 = vld [vmem:[%s0 + $0xc] sm:$0xf]
  %v25 = vunpack.c.l.bf16 %v21
  %v26 = vunpack.c.l.bf16 %v22
  %v27 = vunpack.c.l.bf16 %v23
  %v28 = vunpack.c.l.bf16 %v24
  %v29 = vld [vmem:[%s1] sm:$0x1]
  %v30 = vlaneseq
  %v31 = vshrl.u32 %v30, 7
  %v32 = vsub.s32 0, %v31
  %v33 = vrot.slane %v29, %v32
  %v34 = vmul.f32 %v25, %v33
  %v35 = vmul.f32 %v26, %v33
  %v36 = vmul.f32 %v27, %v33
  %v37 = vmul.f32 %v28, %v33
  %v38 = vadd.f32 %v15, %v34
  %v39 = vadd.f32 %v15, %v35
  %v40 = vadd.f32 %v15, %v36
  %v41 = vadd.f32 %v15, %v37
  %v42 = vld [vmem:[%s1 + $0x12] sm:$0x1]
  %v43 = vlaneseq
  %v44 = vshrl.u32 %v43, 7
  %v45 = vsub.s32 0, %v44
  %v46 = vrot.slane %v42, %v45
  %v47 = vmul.f32 %v25, %v46
  %v48 = vmul.f32 %v26, %v46
  %v49 = vmul.f32 %v27, %v46
  %v50 = vmul.f32 %v28, %v46
  %v51 = vadd.f32 %v20, %v47
  %v52 = vadd.f32 %v20, %v48
  %v53 = vadd.f32 %v20, %v49
  %v54 = vadd.f32 %v20, %v50
  %s55 = scalar_lea.vmem %s0, 16
  %v56 = vld [vmem:[%s55] sm:$0xf]
  %v57 = vld [vmem:[%s55 + $0x4] sm:$0xf]
  %v58 = vld [vmem:[%s55 + $0x8] sm:$0xf]
  %v59 = vld [vmem:[%s55 + $0xc] sm:$0xf]
  %v60 = vunpack.c.l.bf16 %v56
  %v61 = vunpack.c.l.bf16 %v57
  %v62 = vunpack.c.l.bf16 %v58
  %v63 = vunpack.c.l.bf16 %v59
  %v64 = vld [vmem:[%s1 + $0x1] sm:$0x1]
  %v65 = vlaneseq
  %v66 = vshrl.u32 %v65, 7
  %v67 = vsub.s32 0, %v66
  %v68 = vrot.slane %v64, %v67
  %v69 = vmul.f32 %v60, %v68
  %v70 = vmul.f32 %v61, %v68
  %v71 = vmul.f32 %v62, %v68
  %v72 = vmul.f32 %v63, %v68
  %v73 = vadd.f32 %v38, %v69
  %v74 = vadd.f32 %v39, %v70
  %v75 = vadd.f32 %v40, %v71
  %v76 = vadd.f32 %v41, %v72
  %v77 = vld [vmem:[%s1 + $0x13] sm:$0x1]
  %v78 = vlaneseq
  %v79 = vshrl.u32 %v78, 7
  %v80 = vsub.s32 0, %v79
  %v81 = vrot.slane %v77, %v80
  %v82 = vmul.f32 %v60, %v81
  %v83 = vmul.f32 %v61, %v81
  %v84 = vmul.f32 %v62, %v81
  %v85 = vmul.f32 %v63, %v81
  %v86 = vadd.f32 %v51, %v82
  %v87 = vadd.f32 %v52, %v83
  %v88 = vadd.f32 %v53, %v84
  %v89 = vadd.f32 %v54, %v85
  %s90 = scalar_lea.vmem %s0, 32
  %v91 = vld [vmem:[%s90] sm:$0xf]
  %v92 = vld [vmem:[%s90 + $0x4] sm:$0xf]
  %v93 = vld [vmem:[%s90 + $0x8] sm:$0xf]
  %v94 = vld [vmem:[%s90 + $0xc] sm:$0xf]
  %v95 = vunpack.c.l.bf16 %v91
  %v96 = vunpack.c.l.bf16 %v92
  %v97 = vunpack.c.l.bf16 %v93
  %v98 = vunpack.c.l.bf16 %v94
  %v99 = vld [vmem:[%s1 + $0x2] sm:$0x1]
  %v100 = vlaneseq
  %v101 = vshrl.u32 %v100, 7
  %v102 = vsub.s32 0, %v101
  %v103 = vrot.slane %v99, %v102
  %v104 = vmul.f32 %v95, %v103
  %v105 = vmul.f32 %v96, %v103
  %v106 = vmul.f32 %v97, %v103
  %v107 = vmul.f32 %v98, %v103
  %v108 = vadd.f32 %v73, %v104
  %v109 = vadd.f32 %v74, %v105
  %v110 = vadd.f32 %v75, %v106
  %v111 = vadd.f32 %v76, %v107
  %v112 = vld [vmem:[%s1 + $0x14] sm:$0x1]
  %v113 = vlaneseq
  %v114 = vshrl.u32 %v113, 7
  %v115 = vsub.s32 0, %v114
  %v116 = vrot.slane %v112, %v115
  %v117 = vmul.f32 %v95, %v116
  %v118 = vmul.f32 %v96, %v116
  %v119 = vmul.f32 %v97, %v116
  %v120 = vmul.f32 %v98, %v116
  %v121 = vadd.f32 %v86, %v117
  %v122 = vadd.f32 %v87, %v118
  %v123 = vadd.f32 %v88, %v119
  %v124 = vadd.f32 %v89, %v120
  %s125 = scalar_lea.vmem %s0, 48
  %v126 = vld [vmem:[%s125] sm:$0xf]
  %v127 = vld [vmem:[%s125 + $0x4] sm:$0xf]
  %v128 = vld [vmem:[%s125 + $0x8] sm:$0xf]
  %v129 = vld [vmem:[%s125 + $0xc] sm:$0xf]
  %v130 = vunpack.c.l.bf16 %v126
  %v131 = vunpack.c.l.bf16 %v127
  %v132 = vunpack.c.l.bf16 %v128
  %v133 = vunpack.c.l.bf16 %v129
  %v134 = vld [vmem:[%s1 + $0x3] sm:$0x1]
  %v135 = vlaneseq
  %v136 = vshrl.u32 %v135, 7
  %v137 = vsub.s32 0, %v136
  %v138 = vrot.slane %v134, %v137
  %v139 = vmul.f32 %v130, %v138
  %v140 = vmul.f32 %v131, %v138
  %v141 = vmul.f32 %v132, %v138
  %v142 = vmul.f32 %v133, %v138
  %v143 = vadd.f32 %v108, %v139
  %v144 = vadd.f32 %v109, %v140
  %v145 = vadd.f32 %v110, %v141
  %v146 = vadd.f32 %v111, %v142
  %v147 = vld [vmem:[%s1 + $0x15] sm:$0x1]
  %v148 = vlaneseq
  %v149 = vshrl.u32 %v148, 7
  %v150 = vsub.s32 0, %v149
  %v151 = vrot.slane %v147, %v150
  %v152 = vmul.f32 %v130, %v151
  %v153 = vmul.f32 %v131, %v151
  %v154 = vmul.f32 %v132, %v151
  %v155 = vmul.f32 %v133, %v151
  %v156 = vadd.f32 %v121, %v152
  %v157 = vadd.f32 %v122, %v153
  %v158 = vadd.f32 %v123, %v154
  %v159 = vadd.f32 %v124, %v155
  %s160 = scalar_lea.vmem %s0, 64
  %v161 = vld [vmem:[%s160] sm:$0xf]
  %v162 = vld [vmem:[%s160 + $0x4] sm:$0xf]
  %v163 = vld [vmem:[%s160 + $0x8] sm:$0xf]
  %v164 = vld [vmem:[%s160 + $0xc] sm:$0xf]
  %v165 = vunpack.c.l.bf16 %v161
  %v166 = vunpack.c.l.bf16 %v162
  %v167 = vunpack.c.l.bf16 %v163
  %v168 = vunpack.c.l.bf16 %v164
  %v169 = vld [vmem:[%s1 + $0x4] sm:$0x1]
  %v170 = vlaneseq
  %v171 = vshrl.u32 %v170, 7
  %v172 = vsub.s32 0, %v171
  %v173 = vrot.slane %v169, %v172
  %v174 = vmul.f32 %v165, %v173
  %v175 = vmul.f32 %v166, %v173
  %v176 = vmul.f32 %v167, %v173
  %v177 = vmul.f32 %v168, %v173
  %v178 = vadd.f32 %v143, %v174
  %v179 = vadd.f32 %v144, %v175
  %v180 = vadd.f32 %v145, %v176
  %v181 = vadd.f32 %v146, %v177
  %v182 = vld [vmem:[%s1 + $0x16] sm:$0x1]
  %v183 = vlaneseq
  %v184 = vshrl.u32 %v183, 7
  %v185 = vsub.s32 0, %v184
  %v186 = vrot.slane %v182, %v185
  %v187 = vmul.f32 %v165, %v186
  %v188 = vmul.f32 %v166, %v186
  %v189 = vmul.f32 %v167, %v186
  %v190 = vmul.f32 %v168, %v186
  %v191 = vadd.f32 %v156, %v187
  %v192 = vadd.f32 %v157, %v188
  %v193 = vadd.f32 %v158, %v189
  %v194 = vadd.f32 %v159, %v190
  %s195 = scalar_lea.vmem %s0, 80
  %v196 = vld [vmem:[%s195] sm:$0xf]
  %v197 = vld [vmem:[%s195 + $0x4] sm:$0xf]
  %v198 = vld [vmem:[%s195 + $0x8] sm:$0xf]
  %v199 = vld [vmem:[%s195 + $0xc] sm:$0xf]
  %v200 = vunpack.c.l.bf16 %v196
  %v201 = vunpack.c.l.bf16 %v197
  %v202 = vunpack.c.l.bf16 %v198
  %v203 = vunpack.c.l.bf16 %v199
  %v204 = vld [vmem:[%s1 + $0x5] sm:$0x1]
  %v205 = vlaneseq
  %v206 = vshrl.u32 %v205, 7
  %v207 = vsub.s32 0, %v206
  %v208 = vrot.slane %v204, %v207
  %v209 = vmul.f32 %v200, %v208
  %v210 = vmul.f32 %v201, %v208
  %v211 = vmul.f32 %v202, %v208
  %v212 = vmul.f32 %v203, %v208
  %v213 = vadd.f32 %v178, %v209
  %v214 = vadd.f32 %v179, %v210
  %v215 = vadd.f32 %v180, %v211
  %v216 = vadd.f32 %v181, %v212
  %v217 = vld [vmem:[%s1 + $0x17] sm:$0x1]
  %v218 = vlaneseq
  %v219 = vshrl.u32 %v218, 7
  %v220 = vsub.s32 0, %v219
  %v221 = vrot.slane %v217, %v220
  %v222 = vmul.f32 %v200, %v221
  %v223 = vmul.f32 %v201, %v221
  %v224 = vmul.f32 %v202, %v221
  %v225 = vmul.f32 %v203, %v221
  %v226 = vadd.f32 %v191, %v222
  %v227 = vadd.f32 %v192, %v223
  %v228 = vadd.f32 %v193, %v224
  %v229 = vadd.f32 %v194, %v225
  %s230 = scalar_lea.vmem %s0, 96
  %v231 = vld [vmem:[%s230] sm:$0xf]
  %v232 = vld [vmem:[%s230 + $0x4] sm:$0xf]
  %v233 = vld [vmem:[%s230 + $0x8] sm:$0xf]
  %v234 = vld [vmem:[%s230 + $0xc] sm:$0xf]
  %v235 = vunpack.c.l.bf16 %v231
  %v236 = vunpack.c.l.bf16 %v232
  %v237 = vunpack.c.l.bf16 %v233
  %v238 = vunpack.c.l.bf16 %v234
  %v239 = vld [vmem:[%s1 + $0x6] sm:$0x1]
  %v240 = vlaneseq
  %v241 = vshrl.u32 %v240, 7
  %v242 = vsub.s32 0, %v241
  %v243 = vrot.slane %v239, %v242
  %v244 = vmul.f32 %v235, %v243
  %v245 = vmul.f32 %v236, %v243
  %v246 = vmul.f32 %v237, %v243
  %v247 = vmul.f32 %v238, %v243
  %v248 = vadd.f32 %v213, %v244
  %v249 = vadd.f32 %v214, %v245
  %v250 = vadd.f32 %v215, %v246
  %v251 = vadd.f32 %v216, %v247
  %v252 = vld [vmem:[%s1 + $0x18] sm:$0x1]
  %v253 = vlaneseq
  %v254 = vshrl.u32 %v253, 7
  %v255 = vsub.s32 0, %v254
  %v256 = vrot.slane %v252, %v255
  %v257 = vmul.f32 %v235, %v256
  %v258 = vmul.f32 %v236, %v256
  %v259 = vmul.f32 %v237, %v256
  %v260 = vmul.f32 %v238, %v256
  %v261 = vadd.f32 %v226, %v257
  %v262 = vadd.f32 %v227, %v258
  %v263 = vadd.f32 %v228, %v259
  %v264 = vadd.f32 %v229, %v260
  %s265 = scalar_lea.vmem %s0, 112
  %v266 = vld [vmem:[%s265] sm:$0xf]
  %v267 = vld [vmem:[%s265 + $0x4] sm:$0xf]
  %v268 = vld [vmem:[%s265 + $0x8] sm:$0xf]
  %v269 = vld [vmem:[%s265 + $0xc] sm:$0xf]
  %v270 = vunpack.c.l.bf16 %v266
  %v271 = vunpack.c.l.bf16 %v267
  %v272 = vunpack.c.l.bf16 %v268
  %v273 = vunpack.c.l.bf16 %v269
  %v274 = vld [vmem:[%s1 + $0x7] sm:$0x1]
  %v275 = vlaneseq
  %v276 = vshrl.u32 %v275, 7
  %v277 = vsub.s32 0, %v276
  %v278 = vrot.slane %v274, %v277
  %v279 = vmul.f32 %v270, %v278
  %v280 = vmul.f32 %v271, %v278
  %v281 = vmul.f32 %v272, %v278
  %v282 = vmul.f32 %v273, %v278
  %v283 = vadd.f32 %v248, %v279
  %v284 = vadd.f32 %v249, %v280
  %v285 = vadd.f32 %v250, %v281
  %v286 = vadd.f32 %v251, %v282
  %v287 = vld [vmem:[%s1 + $0x19] sm:$0x1]
  %v288 = vlaneseq
  %v289 = vshrl.u32 %v288, 7
  %v290 = vsub.s32 0, %v289
  %v291 = vrot.slane %v287, %v290
  %v292 = vmul.f32 %v270, %v291
  %v293 = vmul.f32 %v271, %v291
  %v294 = vmul.f32 %v272, %v291
  %v295 = vmul.f32 %v273, %v291
  %v296 = vadd.f32 %v261, %v292
  %v297 = vadd.f32 %v262, %v293
  %v298 = vadd.f32 %v263, %v294
  %v299 = vadd.f32 %v264, %v295
  %s300 = scalar_lea.vmem %s0, 128
  %v301 = vld [vmem:[%s300] sm:$0xf]
  %v302 = vld [vmem:[%s300 + $0x4] sm:$0xf]
  %v303 = vld [vmem:[%s300 + $0x8] sm:$0xf]
  %v304 = vld [vmem:[%s300 + $0xc] sm:$0xf]
  %v305 = vunpack.c.l.bf16 %v301
  %v306 = vunpack.c.l.bf16 %v302
  %v307 = vunpack.c.l.bf16 %v303
  %v308 = vunpack.c.l.bf16 %v304
  %v309 = vld [vmem:[%s1 + $0x8] sm:$0x1]
  %v310 = vlaneseq
  %v311 = vshrl.u32 %v310, 7
  %v312 = vsub.s32 0, %v311
  %v313 = vrot.slane %v309, %v312
  %v314 = vmul.f32 %v305, %v313
  %v315 = vmul.f32 %v306, %v313
  %v316 = vmul.f32 %v307, %v313
  %v317 = vmul.f32 %v308, %v313
  %v318 = vadd.f32 %v283, %v314
  %v319 = vadd.f32 %v284, %v315
  %v320 = vadd.f32 %v285, %v316
  %v321 = vadd.f32 %v286, %v317
  %v322 = vld [vmem:[%s1 + $0x1a] sm:$0x1]
  %v323 = vlaneseq
  %v324 = vshrl.u32 %v323, 7
  %v325 = vsub.s32 0, %v324
  %v326 = vrot.slane %v322, %v325
  %v327 = vmul.f32 %v305, %v326
  %v328 = vmul.f32 %v306, %v326
  %v329 = vmul.f32 %v307, %v326
  %v330 = vmul.f32 %v308, %v326
  %v331 = vadd.f32 %v296, %v327
  %v332 = vadd.f32 %v297, %v328
  %v333 = vadd.f32 %v298, %v329
  %v334 = vadd.f32 %v299, %v330
  %s335 = scalar_lea.vmem %s0, 144
  %v336 = vld [vmem:[%s335] sm:$0xf]
  %v337 = vld [vmem:[%s335 + $0x4] sm:$0xf]
  %v338 = vld [vmem:[%s335 + $0x8] sm:$0xf]
  %v339 = vld [vmem:[%s335 + $0xc] sm:$0xf]
  %v340 = vunpack.c.l.bf16 %v336
  %v341 = vunpack.c.l.bf16 %v337
  %v342 = vunpack.c.l.bf16 %v338
  %v343 = vunpack.c.l.bf16 %v339
  %v344 = vld [vmem:[%s1 + $0x9] sm:$0x1]
  %v345 = vlaneseq
  %v346 = vshrl.u32 %v345, 7
  %v347 = vsub.s32 0, %v346
  %v348 = vrot.slane %v344, %v347
  %v349 = vmul.f32 %v340, %v348
  %v350 = vmul.f32 %v341, %v348
  %v351 = vmul.f32 %v342, %v348
  %v352 = vmul.f32 %v343, %v348
  %v353 = vadd.f32 %v318, %v349
  %v354 = vadd.f32 %v319, %v350
  %v355 = vadd.f32 %v320, %v351
  %v356 = vadd.f32 %v321, %v352
  %v357 = vld [vmem:[%s1 + $0x1b] sm:$0x1]
  %v358 = vlaneseq
  %v359 = vshrl.u32 %v358, 7
  %v360 = vsub.s32 0, %v359
  %v361 = vrot.slane %v357, %v360
  %v362 = vmul.f32 %v340, %v361
  %v363 = vmul.f32 %v341, %v361
  %v364 = vmul.f32 %v342, %v361
  %v365 = vmul.f32 %v343, %v361
  %v366 = vadd.f32 %v331, %v362
  %v367 = vadd.f32 %v332, %v363
  %v368 = vadd.f32 %v333, %v364
  %v369 = vadd.f32 %v334, %v365
  %s370 = scalar_lea.vmem %s0, 160
  %v371 = vld [vmem:[%s370] sm:$0xf]
  %v372 = vld [vmem:[%s370 + $0x4] sm:$0xf]
  %v373 = vld [vmem:[%s370 + $0x8] sm:$0xf]
  %v374 = vld [vmem:[%s370 + $0xc] sm:$0xf]
  %v375 = vunpack.c.l.bf16 %v371
  %v376 = vunpack.c.l.bf16 %v372
  %v377 = vunpack.c.l.bf16 %v373
  %v378 = vunpack.c.l.bf16 %v374
  %v379 = vld [vmem:[%s1 + $0xa] sm:$0x1]
  %v380 = vlaneseq
  %v381 = vshrl.u32 %v380, 7
  %v382 = vsub.s32 0, %v381
  %v383 = vrot.slane %v379, %v382
  %v384 = vmul.f32 %v375, %v383
  %v385 = vmul.f32 %v376, %v383
  %v386 = vmul.f32 %v377, %v383
  %v387 = vmul.f32 %v378, %v383
  %v388 = vadd.f32 %v353, %v384
  %v389 = vadd.f32 %v354, %v385
  %v390 = vadd.f32 %v355, %v386
  %v391 = vadd.f32 %v356, %v387
  %v392 = vld [vmem:[%s1 + $0x1c] sm:$0x1]
  %v393 = vlaneseq
  %v394 = vshrl.u32 %v393, 7
  %v395 = vsub.s32 0, %v394
  %v396 = vrot.slane %v392, %v395
  %v397 = vmul.f32 %v375, %v396
  %v398 = vmul.f32 %v376, %v396
  %v399 = vmul.f32 %v377, %v396
  %v400 = vmul.f32 %v378, %v396
  %v401 = vadd.f32 %v366, %v397
  %v402 = vadd.f32 %v367, %v398
  %v403 = vadd.f32 %v368, %v399
  %v404 = vadd.f32 %v369, %v400
  %s405 = scalar_lea.vmem %s0, 176
  %v406 = vld [vmem:[%s405] sm:$0xf]
  %v407 = vld [vmem:[%s405 + $0x4] sm:$0xf]
  %v408 = vld [vmem:[%s405 + $0x8] sm:$0xf]
  %v409 = vld [vmem:[%s405 + $0xc] sm:$0xf]
  %v410 = vunpack.c.l.bf16 %v406
  %v411 = vunpack.c.l.bf16 %v407
  %v412 = vunpack.c.l.bf16 %v408
  %v413 = vunpack.c.l.bf16 %v409
  %v414 = vld [vmem:[%s1 + $0xb] sm:$0x1]
  %v415 = vlaneseq
  %v416 = vshrl.u32 %v415, 7
  %v417 = vsub.s32 0, %v416
  %v418 = vrot.slane %v414, %v417
  %v419 = vmul.f32 %v410, %v418
  %v420 = vmul.f32 %v411, %v418
  %v421 = vmul.f32 %v412, %v418
  %v422 = vmul.f32 %v413, %v418
  %v423 = vadd.f32 %v388, %v419
  %v424 = vadd.f32 %v389, %v420
  %v425 = vadd.f32 %v390, %v421
  %v426 = vadd.f32 %v391, %v422
  %v427 = vld [vmem:[%s1 + $0x1d] sm:$0x1]
  %v428 = vlaneseq
  %v429 = vshrl.u32 %v428, 7
  %v430 = vsub.s32 0, %v429
  %v431 = vrot.slane %v427, %v430
  %v432 = vmul.f32 %v410, %v431
  %v433 = vmul.f32 %v411, %v431
  %v434 = vmul.f32 %v412, %v431
  %v435 = vmul.f32 %v413, %v431
  %v436 = vadd.f32 %v401, %v432
  %v437 = vadd.f32 %v402, %v433
  %v438 = vadd.f32 %v403, %v434
  %v439 = vadd.f32 %v404, %v435
  %s440 = scalar_lea.vmem %s0, 192
  %v441 = vld [vmem:[%s440] sm:$0xf]
  %v442 = vld [vmem:[%s440 + $0x4] sm:$0xf]
  %v443 = vld [vmem:[%s440 + $0x8] sm:$0xf]
  %v444 = vld [vmem:[%s440 + $0xc] sm:$0xf]
  %v445 = vunpack.c.l.bf16 %v441
  %v446 = vunpack.c.l.bf16 %v442
  %v447 = vunpack.c.l.bf16 %v443
  %v448 = vunpack.c.l.bf16 %v444
  %v449 = vld [vmem:[%s1 + $0xc] sm:$0x1]
  %v450 = vlaneseq
  %v451 = vshrl.u32 %v450, 7
  %v452 = vsub.s32 0, %v451
  %v453 = vrot.slane %v449, %v452
  %v454 = vmul.f32 %v445, %v453
  %v455 = vmul.f32 %v446, %v453
  %v456 = vmul.f32 %v447, %v453
  %v457 = vmul.f32 %v448, %v453
  %v458 = vadd.f32 %v423, %v454
  %v459 = vadd.f32 %v424, %v455
  %v460 = vadd.f32 %v425, %v456
  %v461 = vadd.f32 %v426, %v457
  %v462 = vld [vmem:[%s1 + $0x1e] sm:$0x1]
  %v463 = vlaneseq
  %v464 = vshrl.u32 %v463, 7
  %v465 = vsub.s32 0, %v464
  %v466 = vrot.slane %v462, %v465
  %v467 = vmul.f32 %v445, %v466
  %v468 = vmul.f32 %v446, %v466
  %v469 = vmul.f32 %v447, %v466
  %v470 = vmul.f32 %v448, %v466
  %v471 = vadd.f32 %v436, %v467
  %v472 = vadd.f32 %v437, %v468
  %v473 = vadd.f32 %v438, %v469
  %v474 = vadd.f32 %v439, %v470
  %s475 = scalar_lea.vmem %s0, 208
  %v476 = vld [vmem:[%s475] sm:$0xf]
  %v477 = vld [vmem:[%s475 + $0x4] sm:$0xf]
  %v478 = vld [vmem:[%s475 + $0x8] sm:$0xf]
  %v479 = vld [vmem:[%s475 + $0xc] sm:$0xf]
  %v480 = vunpack.c.l.bf16 %v476
  %v481 = vunpack.c.l.bf16 %v477
  %v482 = vunpack.c.l.bf16 %v478
  %v483 = vunpack.c.l.bf16 %v479
  %v484 = vld [vmem:[%s1 + $0xd] sm:$0x1]
  %v485 = vlaneseq
  %v486 = vshrl.u32 %v485, 7
  %v487 = vsub.s32 0, %v486
  %v488 = vrot.slane %v484, %v487
  %v489 = vmul.f32 %v480, %v488
  %v490 = vmul.f32 %v481, %v488
  %v491 = vmul.f32 %v482, %v488
  %v492 = vmul.f32 %v483, %v488
  %v493 = vadd.f32 %v458, %v489
  %v494 = vadd.f32 %v459, %v490
  %v495 = vadd.f32 %v460, %v491
  %v496 = vadd.f32 %v461, %v492
  %v497 = vld [vmem:[%s1 + $0x1f] sm:$0x1]
  %v498 = vlaneseq
  %v499 = vshrl.u32 %v498, 7
  %v500 = vsub.s32 0, %v499
  %v501 = vrot.slane %v497, %v500
  %v502 = vmul.f32 %v480, %v501
  %v503 = vmul.f32 %v481, %v501
  %v504 = vmul.f32 %v482, %v501
  %v505 = vmul.f32 %v483, %v501
  %v506 = vadd.f32 %v471, %v502
  %v507 = vadd.f32 %v472, %v503
  %v508 = vadd.f32 %v473, %v504
  %v509 = vadd.f32 %v474, %v505
  %s510 = scalar_lea.vmem %s0, 224
  %v511 = vld [vmem:[%s510] sm:$0xf]
  %v512 = vld [vmem:[%s510 + $0x4] sm:$0xf]
  %v513 = vld [vmem:[%s510 + $0x8] sm:$0xf]
  %v514 = vld [vmem:[%s510 + $0xc] sm:$0xf]
  %v515 = vunpack.c.l.bf16 %v511
  %v516 = vunpack.c.l.bf16 %v512
  %v517 = vunpack.c.l.bf16 %v513
  %v518 = vunpack.c.l.bf16 %v514
  %v519 = vld [vmem:[%s1 + $0xe] sm:$0x1]
  %v520 = vlaneseq
  %v521 = vshrl.u32 %v520, 7
  %v522 = vsub.s32 0, %v521
  %v523 = vrot.slane %v519, %v522
  %v524 = vmul.f32 %v515, %v523
  %v525 = vmul.f32 %v516, %v523
  %v526 = vmul.f32 %v517, %v523
  %v527 = vmul.f32 %v518, %v523
  %v528 = vadd.f32 %v493, %v524
  %v529 = vadd.f32 %v494, %v525
  %v530 = vadd.f32 %v495, %v526
  %v531 = vadd.f32 %v496, %v527
  %v532 = vld [vmem:[%s1 + $0x20] sm:$0x1]
  %v533 = vlaneseq
  %v534 = vshrl.u32 %v533, 7
  %v535 = vsub.s32 0, %v534
  %v536 = vrot.slane %v532, %v535
  %v537 = vmul.f32 %v515, %v536
  %v538 = vmul.f32 %v516, %v536
  %v539 = vmul.f32 %v517, %v536
  %v540 = vmul.f32 %v518, %v536
  %v541 = vadd.f32 %v506, %v537
  %v542 = vadd.f32 %v507, %v538
  %v543 = vadd.f32 %v508, %v539
  %v544 = vadd.f32 %v509, %v540
  %s545 = scalar_lea.vmem %s0, 240
  %v546 = vld [vmem:[%s545] sm:$0xf]
  %v547 = vld [vmem:[%s545 + $0x4] sm:$0xf]
  %v548 = vld [vmem:[%s545 + $0x8] sm:$0xf]
  %v549 = vld [vmem:[%s545 + $0xc] sm:$0xf]
  %v550 = vunpack.c.l.bf16 %v546
  %v551 = vunpack.c.l.bf16 %v547
  %v552 = vunpack.c.l.bf16 %v548
  %v553 = vunpack.c.l.bf16 %v549
  %v554 = vld [vmem:[%s1 + $0xf] sm:$0x1]
  %v555 = vlaneseq
  %v556 = vshrl.u32 %v555, 7
  %v557 = vsub.s32 0, %v556
  %v558 = vrot.slane %v554, %v557
  %v559 = vmul.f32 %v550, %v558
  %v560 = vmul.f32 %v551, %v558
  %v561 = vmul.f32 %v552, %v558
  %v562 = vmul.f32 %v553, %v558
  %v563 = vadd.f32 %v528, %v559
  %v564 = vadd.f32 %v529, %v560
  %v565 = vadd.f32 %v530, %v561
  %v566 = vadd.f32 %v531, %v562
  %v567 = vld [vmem:[%s1 + $0x21] sm:$0x1]
  %v568 = vlaneseq
  %v569 = vshrl.u32 %v568, 7
  %v570 = vsub.s32 0, %v569
  %v571 = vrot.slane %v567, %v570
  %v572 = vmul.f32 %v550, %v571
  %v573 = vmul.f32 %v551, %v571
  %v574 = vmul.f32 %v552, %v571
  %v575 = vmul.f32 %v553, %v571
  %v576 = vadd.f32 %v541, %v572
  %v577 = vadd.f32 %v542, %v573
  %v578 = vadd.f32 %v543, %v574
  %v579 = vadd.f32 %v544, %v575
  %s580 = scalar_lea.vmem %s0, 256
  %v581 = vld [vmem:[%s580] sm:$0xf]
  %v582 = vld [vmem:[%s580 + $0x4] sm:$0xf]
  %v583 = vld [vmem:[%s580 + $0x8] sm:$0xf]
  %v584 = vld [vmem:[%s580 + $0xc] sm:$0xf]
  %v585 = vunpack.c.l.bf16 %v581
  %v586 = vunpack.c.l.bf16 %v582
  %v587 = vunpack.c.l.bf16 %v583
  %v588 = vunpack.c.l.bf16 %v584
  %v589 = vld [vmem:[%s1 + $0x10] sm:$0x1]
  %v590 = vlaneseq
  %v591 = vshrl.u32 %v590, 7
  %v592 = vsub.s32 0, %v591
  %v593 = vrot.slane %v589, %v592
  %v594 = vmul.f32 %v585, %v593
  %v595 = vmul.f32 %v586, %v593
  %v596 = vmul.f32 %v587, %v593
  %v597 = vmul.f32 %v588, %v593
  %v598 = vadd.f32 %v563, %v594
  %v599 = vadd.f32 %v564, %v595
  %v600 = vadd.f32 %v565, %v596
  %v601 = vadd.f32 %v566, %v597
  %v602 = vld [vmem:[%s1 + $0x22] sm:$0x1]
  %v603 = vlaneseq
  %v604 = vshrl.u32 %v603, 7
  %v605 = vsub.s32 0, %v604
  %v606 = vrot.slane %v602, %v605
  %v607 = vmul.f32 %v585, %v606
  %v608 = vmul.f32 %v586, %v606
  %v609 = vmul.f32 %v587, %v606
  %v610 = vmul.f32 %v588, %v606
  %v611 = vadd.f32 %v576, %v607
  %v612 = vadd.f32 %v577, %v608
  %v613 = vadd.f32 %v578, %v609
  %v614 = vadd.f32 %v579, %v610
  %s615 = scalar_lea.vmem %s0, 272
  %v616 = vld [vmem:[%s615] sm:$0xf]
  %v617 = vld [vmem:[%s615 + $0x4] sm:$0xf]
  %v618 = vld [vmem:[%s615 + $0x8] sm:$0xf]
  %v619 = vld [vmem:[%s615 + $0xc] sm:$0xf]
  %v620 = vunpack.c.l.bf16 %v616
  %v621 = vunpack.c.l.bf16 %v617
  %v622 = vunpack.c.l.bf16 %v618
  %v623 = vunpack.c.l.bf16 %v619
  %v624 = vld [vmem:[%s1 + $0x11] sm:$0x1]
  %v625 = vlaneseq
  %v626 = vshrl.u32 %v625, 7
  %v627 = vsub.s32 0, %v626
  %v628 = vrot.slane %v624, %v627
  %v629 = vmul.f32 %v620, %v628
  %v630 = vmul.f32 %v621, %v628
  %v631 = vmul.f32 %v622, %v628
  %v632 = vmul.f32 %v623, %v628
  %v633 = vadd.f32 %v598, %v629
  %v634 = vadd.f32 %v599, %v630
  %v635 = vadd.f32 %v600, %v631
  %v636 = vadd.f32 %v601, %v632
  %v637 = vld [vmem:[%s1 + $0x23] sm:$0x1]
  %v638 = vlaneseq
  %v639 = vshrl.u32 %v638, 7
  %v640 = vsub.s32 0, %v639
  %v641 = vrot.slane %v637, %v640
  %v642 = vmul.f32 %v620, %v641
  %v643 = vmul.f32 %v621, %v641
  %v644 = vmul.f32 %v622, %v641
  %v645 = vmul.f32 %v623, %v641
  %v646 = vadd.f32 %v611, %v642
  %v647 = vadd.f32 %v612, %v643
  %v648 = vadd.f32 %v613, %v644
  %v649 = vadd.f32 %v614, %v645
  %v650 = vld [vmem:[%s1 + $0x26] sm:$0x1]
  %v651 = vld [vmem:[%s1 + $0x28] sm:$0x1]
  %v652 = vadd.f32 %v633, %v634
  %v653 = vadd.f32 %v652, %v635
  %v654 = vadd.f32 %v653, %v636
  %v655 = vrot.slane %v654, 4
  %v656 = vadd.f32 %v654, %v655
  %v657 = vrot.slane %v656, 2
  %v658 = vadd.f32 %v656, %v657
  %v659 = vrot.slane %v658, 1
  %v660 = vadd.f32 %v658, %v659
  %v661 = vrcp.pop 32.0
  %v662 = vmul.f32 %v660, %v661
  %v663 = vsub.f32 %v633, %v662
  %v664 = vsub.f32 %v634, %v662
  %v665 = vsub.f32 %v635, %v662
  %v666 = vsub.f32 %v636, %v662
  %v667 = vmul.f32 %v663, %v663
  %v668 = vmul.f32 %v664, %v664
  %v669 = vmul.f32 %v665, %v665
  %v670 = vmul.f32 %v666, %v666
  %v671 = vadd.f32 %v667, %v668
  %v672 = vadd.f32 %v671, %v669
  %v673 = vadd.f32 %v672, %v670
  %v674 = vrot.slane %v673, 4
  %v675 = vadd.f32 %v673, %v674
  %v676 = vrot.slane %v675, 2
  %v677 = vadd.f32 %v675, %v676
  %v678 = vrot.slane %v677, 1
  %v679 = vadd.f32 %v677, %v678
  %v680 = vmul.f32 %v679, %v661
  %v681 = vadd.f32 %v680, 1e-05
  %v682 = vrsqrt.pop %v681
  %v683 = vmul.f32 %v663, %v682
  %v684 = vmul.f32 %v664, %v682
  %v685 = vmul.f32 %v665, %v682
  %v686 = vmul.f32 %v666, %v682
  %v687 = vlaneseq
  %v688 = vshrl.u32 %v687, 7
  %v689 = vsub.s32 0, %v688
  %v690 = vrot.slane %v650, %v689
  %v691 = vmul.f32 %v683, %v690
  %v692 = vmul.f32 %v684, %v690
  %v693 = vmul.f32 %v685, %v690
  %v694 = vmul.f32 %v686, %v690
  %v695 = vlaneseq
  %v696 = vshrl.u32 %v695, 7
  %v697 = vsub.s32 0, %v696
  %v698 = vrot.slane %v651, %v697
  %v699 = vadd.f32 %v691, %v698
  %v700 = vadd.f32 %v692, %v698
  %v701 = vadd.f32 %v693, %v698
  %v702 = vadd.f32 %v694, %v698
  %vm703 = vcmp.gt.f32.partialorder %v699, 0.0
  %vm704 = vcmp.gt.f32.partialorder %v700, 0.0
  %vm705 = vcmp.gt.f32.partialorder %v701, 0.0
  %vm706 = vcmp.gt.f32.partialorder %v702, 0.0
  %v707 = vmul.f32 %v699, 0.01
  %v708 = vmul.f32 %v700, 0.01
  %v709 = vmul.f32 %v701, 0.01
  %v710 = vmul.f32 %v702, 0.01
  %v711 = vsel %vm703, %v699, %v707
  %v712 = vsel %vm704, %v700, %v708
  %v713 = vsel %vm705, %v701, %v709
  %v714 = vsel %vm706, %v702, %v710
  %v715 = vmax.f32 %v711, %v712
  %v716 = vmax.f32 %v713, %v714
  %v717 = vmax.f32 %v715, %v716
  %v719 = vcombine.high %v717, %v717
  %v721 = vld [vmem:[%s1 + $0x27] sm:$0x1]
  %v722 = vld [vmem:[%s1 + $0x29] sm:$0x1]
  %v723 = vadd.f32 %v646, %v647
  %v724 = vadd.f32 %v723, %v648
  %v725 = vadd.f32 %v724, %v649
  %v726 = vrot.slane %v725, 4
  %v727 = vadd.f32 %v725, %v726
  %v728 = vrot.slane %v727, 2
  %v729 = vadd.f32 %v727, %v728
  %v730 = vrot.slane %v729, 1
  %v731 = vadd.f32 %v729, %v730
  %v732 = vmul.f32 %v731, %v661
  %v733 = vsub.f32 %v646, %v732
  %v734 = vsub.f32 %v647, %v732
  %v735 = vsub.f32 %v648, %v732
  %v736 = vsub.f32 %v649, %v732
  %v737 = vmul.f32 %v733, %v733
  %v738 = vmul.f32 %v734, %v734
  %v739 = vmul.f32 %v735, %v735
  %v740 = vmul.f32 %v736, %v736
  %v741 = vadd.f32 %v737, %v738
  %v742 = vadd.f32 %v741, %v739
  %v743 = vadd.f32 %v742, %v740
  %v744 = vrot.slane %v743, 4
  %v745 = vadd.f32 %v743, %v744
  %v746 = vrot.slane %v745, 2
  %v747 = vadd.f32 %v745, %v746
  %v748 = vrot.slane %v747, 1
  %v749 = vadd.f32 %v747, %v748
  %v750 = vmul.f32 %v749, %v661
  %v751 = vadd.f32 %v750, 1e-05
  %v752 = vrsqrt.pop %v751
  %v753 = vmul.f32 %v733, %v752
  %v754 = vmul.f32 %v734, %v752
  %v755 = vmul.f32 %v735, %v752
  %v756 = vmul.f32 %v736, %v752
  %v757 = vlaneseq
  %v758 = vshrl.u32 %v757, 7
  %v759 = vsub.s32 0, %v758
  %v760 = vrot.slane %v721, %v759
  %v761 = vmul.f32 %v753, %v760
  %v762 = vmul.f32 %v754, %v760
  %v763 = vmul.f32 %v755, %v760
  %v764 = vmul.f32 %v756, %v760
  %v765 = vlaneseq
  %v766 = vshrl.u32 %v765, 7
  %v767 = vsub.s32 0, %v766
  %v768 = vrot.slane %v722, %v767
  %v769 = vadd.f32 %v761, %v768
  %v770 = vadd.f32 %v762, %v768
  %v771 = vadd.f32 %v763, %v768
  %v772 = vadd.f32 %v764, %v768
  %vm773 = vcmp.gt.f32.partialorder %v769, 0.0
  %vm774 = vcmp.gt.f32.partialorder %v770, 0.0
  %vm775 = vcmp.gt.f32.partialorder %v771, 0.0
  %vm776 = vcmp.gt.f32.partialorder %v772, 0.0
  %v777 = vmul.f32 %v769, 0.01
  %v778 = vmul.f32 %v770, 0.01
  %v779 = vmul.f32 %v771, 0.01
  %v780 = vmul.f32 %v772, 0.01
  %v781 = vsel %vm773, %v769, %v777
  %v782 = vsel %vm774, %v770, %v778
  %v783 = vsel %vm775, %v771, %v779
  %v784 = vsel %vm776, %v772, %v780
  %v785 = vmax.f32 %v781, %v782
  %v786 = vmax.f32 %v783, %v784
  %v787 = vmax.f32 %v785, %v786
  %v789 = vcombine.high %v787, %v787
  %v791 = vld [vmem:[%s1 + $0x6a] sm:$0xff]
  %v792 = vld [vmem:[%s1 + $0x2a] sm:$0xff]
  %v793 = vld [vmem:[%s1 + $0x4a] sm:$0xff]
  %v794 = vlaneseq
  %v795 = vshrl.u32 %v794, 7
  %v796 = vsub.s32 0, %v795
  %v797 = vrot.slane %v717, %v796
  %v798 = vlaneseq
  %v799 = vshrl.u32 %v798, 7
  %v800 = vsub.s32 0, %v799
  %v801 = vrot.slane %v719, %v800
  %v802 = vmul.f32 %v797, %v792
  %v803 = vmul.f32 %v801, %v792
  %v804 = vadd.f32 %v791, %v802
  %v805 = vadd.f32 %v791, %v803
  %v806 = vlaneseq
  %v807 = vshrl.u32 %v806, 7
  %v808 = vsub.s32 0, %v807
  %v809 = vrot.slane %v787, %v808
  %v810 = vlaneseq
  %v811 = vshrl.u32 %v810, 7
  %v812 = vsub.s32 0, %v811
  %v813 = vrot.slane %v789, %v812
  %v814 = vmul.f32 %v809, %v793
  %v815 = vmul.f32 %v813, %v793
  %v816 = vadd.f32 %v804, %v814
  %v817 = vadd.f32 %v805, %v815
  %v818 = vld [vmem:[%s1 + $0x32] sm:$0xff]
  %v819 = vld [vmem:[%s1 + $0x52] sm:$0xff]
  %v820 = vlaneseq
  %v821 = vshrl.u32 %v820, 7
  %v822 = vsub.s32 1, %v821
  %v823 = vrot.slane %v717, %v822
  %v824 = vlaneseq
  %v825 = vshrl.u32 %v824, 7
  %v826 = vsub.s32 1, %v825
  %v827 = vrot.slane %v719, %v826
  %v828 = vmul.f32 %v823, %v818
  %v829 = vmul.f32 %v827, %v818
  %v830 = vadd.f32 %v816, %v828
  %v831 = vadd.f32 %v817, %v829
  %v832 = vlaneseq
  %v833 = vshrl.u32 %v832, 7
  %v834 = vsub.s32 1, %v833
  %v835 = vrot.slane %v787, %v834
  %v836 = vlaneseq
  %v837 = vshrl.u32 %v836, 7
  %v838 = vsub.s32 1, %v837
  %v839 = vrot.slane %v789, %v838
  %v840 = vmul.f32 %v835, %v819
  %v841 = vmul.f32 %v839, %v819
  %v842 = vadd.f32 %v830, %v840
  %v843 = vadd.f32 %v831, %v841
  %v844 = vld [vmem:[%s1 + $0x3a] sm:$0xff]
  %v845 = vld [vmem:[%s1 + $0x5a] sm:$0xff]
  %v846 = vlaneseq
  %v847 = vshrl.u32 %v846, 7
  %v848 = vsub.s32 2, %v847
  %v849 = vrot.slane %v717, %v848
  %v850 = vlaneseq
  %v851 = vshrl.u32 %v850, 7
  %v852 = vsub.s32 2, %v851
  %v853 = vrot.slane %v719, %v852
  %v854 = vmul.f32 %v849, %v844
  %v855 = vmul.f32 %v853, %v844
  %v856 = vadd.f32 %v842, %v854
  %v857 = vadd.f32 %v843, %v855
  %v858 = vlaneseq
  %v859 = vshrl.u32 %v858, 7
  %v860 = vsub.s32 2, %v859
  %v861 = vrot.slane %v787, %v860
  %v862 = vlaneseq
  %v863 = vshrl.u32 %v862, 7
  %v864 = vsub.s32 2, %v863
  %v865 = vrot.slane %v789, %v864
  %v866 = vmul.f32 %v861, %v845
  %v867 = vmul.f32 %v865, %v845
  %v868 = vadd.f32 %v856, %v866
  %v869 = vadd.f32 %v857, %v867
  %v870 = vld [vmem:[%s1 + $0x42] sm:$0xff]
  %v871 = vld [vmem:[%s1 + $0x62] sm:$0xff]
  %v872 = vlaneseq
  %v873 = vshrl.u32 %v872, 7
  %v874 = vsub.s32 3, %v873
  %v875 = vrot.slane %v717, %v874
  %v876 = vlaneseq
  %v877 = vshrl.u32 %v876, 7
  %v878 = vsub.s32 3, %v877
  %v879 = vrot.slane %v719, %v878
  %v880 = vmul.f32 %v875, %v870
  %v881 = vmul.f32 %v879, %v870
  %v882 = vadd.f32 %v868, %v880
  %v883 = vadd.f32 %v869, %v881
  %v884 = vlaneseq
  %v885 = vshrl.u32 %v884, 7
  %v886 = vsub.s32 3, %v885
  %v887 = vrot.slane %v787, %v886
  %v888 = vlaneseq
  %v889 = vshrl.u32 %v888, 7
  %v890 = vsub.s32 3, %v889
  %v891 = vrot.slane %v789, %v890
  %v892 = vmul.f32 %v887, %v871
  %v893 = vmul.f32 %v891, %v871
  %v894 = vadd.f32 %v882, %v892
  %v895 = vadd.f32 %v883, %v893
  %v896 = vld [vmem:[%s1 + $0x72] sm:$0xff]
  %v897 = vmul.f32 %v894, %v896
  %v898 = vmul.f32 %v895, %v896
  %v899 = vrot.slane %v897, 4
  %v900 = vadd.f32 %v897, %v899
  %v901 = vrot.slane %v900, 2
  %v902 = vadd.f32 %v900, %v901
  %v903 = vrot.slane %v902, 1
  %v904 = vadd.f32 %v902, %v903
  %v905 = vrot.slane %v898, 4
  %v906 = vadd.f32 %v898, %v905
  %v907 = vrot.slane %v906, 2
  %v908 = vadd.f32 %v906, %v907
  %v909 = vrot.slane %v908, 1
  %v910 = vadd.f32 %v908, %v909
  %v911 = vld [vmem:[%s1 + $0x7a] sm:$0x1]
  %v912 = vlaneseq
  %v913 = vshrl.u32 %v912, 7
  %v914 = vsub.s32 0, %v913
  %v915 = vrot.slane %v911, %v914
  %v916 = vadd.f32 %v904, %v915
  %v917 = vadd.f32 %v910, %v915
  %v920 = vrot.slane %v917, 7
  %vm921 = vcmask 1041409
  %v922 = vsel %vm921, %v920, %v916
  %924 = vst [vmem:[%s2] sm:$0x3] %v922
  // Predicated region
  $region10: #{rm_network_forward.1} parent=0 // pred_check
    _
  $region11: #{rm_network_forward.1} parent=0 // pred_check_branch
    %926 = sbr.rel (0) target = $region13
  $region12: #{rm_network_forward.1} parent=0 // pred_region
    _
  $region13: #{rm_network_forward.1} parent=0 // pred_fallthru
    _
  // Predicated region
  $region14: #{rm_network_forward.1} parent=0 // pred_check
    _
  $region15: #{rm_network_forward.1} parent=0 // pred_check_branch
    %928 = sbr.rel (0) target = $region17
  $region16: #{rm_network_forward.1} parent=0 // pred_region
    _
  $region17: #{rm_network_forward.1} parent=0 // pred_fallthru
    _

</llo_original>
